<compile_context>
chip_gen: v5e
topology: v5e:2x2
jax: 0.10.0
libtpu: 0.0.40
codegen_flags: <defaults>
</compile_context>

<pallas_src>
import functools

import jax
import jax.numpy as jnp
from jax import lax
from jax.experimental import pallas as pl
from jax.experimental.pallas import tpu as pltpu

NAVEC_EMB_DIM = 300
# Above this sequence length the time loop runs as lax.fori_loop(unroll=8)
# instead of a full static unroll (caps vreg pressure / code size).
_UNROLL_THRESHOLD = 16


# ----------------------------- fused kernel ---------------------------------
def _fused_kernel(ids_ref,                                   # SMEM (B, S) int32
                  table_ref,                                 # HBM  (V, Kp) f32
                  w_emb_ref, b_emb_ref,                      # (Kp,E) bf16, (1,E) f32
                  wih_ref, b_lstm_ref,                       # (E,4H) bf16, (1,4H) f32
                  whh_ref,                                   # (H,4H) bf16
                  w_proj_ref, b_proj_ref,                    # (1,H) f32, (1,1) f32
                  o_ref,                                     # (S, BB, 1) f32 block
                  row_buf, gates_sc, sem):                   # scratch
    S, BB, _ = o_ref.shape
    H = whh_ref.shape[0]
    N = S * BB
    b0 = pl.program_id(0) * BB          # first batch row handled by this block

    # ---- 1. embedding gather: one aligned row DMA per token (table in HBM).
    # Rows are written time-major (row j <-> time t = j // BB, local batch
    # lb = j % BB) so the recurrence just slices BB consecutive rows per step.
    # TODO(synk): duplicate token ids could be deduped before the DMA loop.
    for j in range(N):
        t, lb = divmod(j, BB)
        tok = ids_ref[b0 + lb, t]
        pltpu.make_async_copy(table_ref.at[pl.ds(tok, 1)],
                              row_buf.at[pl.ds(j, 1)], sem.at[0]).start()
    for j in range(N):
        t, lb = divmod(j, BB)
        tok = ids_ref[b0 + lb, t]       # same descriptor as the start() above
        pltpu.make_async_copy(table_ref.at[pl.ds(tok, 1)],
                              row_buf.at[pl.ds(j, 1)], sem.at[0]).wait()

    # ---- 2. Linear(300->E) + ReLU and the hoisted input-gate matmul ----
    # bf16 MXU operands, f32 accumulation; one big M=N matmul instead of S
    # small ones.  Result is a lane-dense (N, 4H = 128) scratch tile (never
    # leaves VMEM, no masked partial stores).
    x = row_buf[...].astype(jnp.bfloat16)                              # (N, Kp)
    h1 = jnp.maximum(
        jnp.dot(x, w_emb_ref[...], preferred_element_type=jnp.float32)
        + b_emb_ref[...], 0.0)                                         # (N, E) f32
    gates_sc[...] = (
        jnp.dot(h1.astype(jnp.bfloat16), wih_ref[...],
                preferred_element_type=jnp.float32) + b_lstm_ref[...]) # (N, 4H)

    # ---- 3. LSTM recurrence + fused H->1 projection ----
    whh = whh_ref[...]                      # (H, 4H) resident across the loop
    w_proj = w_proj_ref[...]                # (1, H)
    b_proj = b_proj_ref[0, 0]

    def step(t, h, c):
        # single fused (BB,H)@(H,4H) recurrent matmul (output exactly 128
        # lanes); per-gate split is static lane slicing on otherwise idle
        # VPU/XLU slots.  PyTorch gate order: i, f, g, o.
        g_t = gates_sc[pl.ds(t * BB, BB), :] + jnp.dot(
            h.astype(jnp.bfloat16), whh, preferred_element_type=jnp.float32)
        i_g = jax.nn.sigmoid(g_t[:, 0 * H:1 * H])
        f_g = jax.nn.sigmoid(g_t[:, 1 * H:2 * H])
        g_g = jnp.tanh(g_t[:, 2 * H:3 * H])
        o_g = jax.nn.sigmoid(g_t[:, 3 * H:4 * H])
        c = f_g * c + i_g * g_g
        h = o_g * jnp.tanh(c)
        # per-step logit written straight into the output block (it doubles
        # as the logits buffer): O(S) work, no (B,S) select on the chain.
        o_ref[t] = jnp.sum(h * w_proj, axis=1, keepdims=True) + b_proj
        return h, c

    h = jnp.zeros((BB, H), jnp.float32)
    c = jnp.zeros((BB, H), jnp.float32)
    if S <= _UNROLL_THRESHOLD:
        for t in range(S):                          # full static unroll (tiny S)
            h, c = step(t, h, c)
    else:                                           # bounded unroll for large S
        h, c = lax.fori_loop(0, S, lambda t, hc: step(t, *hc), (h, c), unroll=8)

    # ---- 4. softmax over the sequence axis (exact divide) ----
    lg = o_ref[...]                                            # (S, BB, 1) logits
    m = jnp.max(lg, axis=0, keepdims=True)
    e = jnp.exp(lg - m)
    o_ref[...] = e / jnp.sum(e, axis=0, keepdims=True)


# ------------------------------ wrapper -------------------------------------
@functools.partial(jax.jit, static_argnames=("batch_block",))
def forward(ids, params, batch_block=None):
    """ids: (B, S) int32 token ids -> (B, S) softmax over the sequence axis."""
    B, S = ids.shape
    table = params["emb_table"]
    _, Kp = table.shape
    E = params["w_emb"].shape[1]
    H = params["whh"].shape[0]
    G4 = 4 * H

    # >1 batch block gives v7x's two TensorCores independent "parallel" work
    # and also bounds the per-block VMEM footprint at realistic B*S.
    if batch_block is None:
        batch_block = B // 2 if (B % 2 == 0 and B >= 2) else B
    BB = batch_block
    assert B % BB == 0, (B, BB)
    NB = B // BB
    N = BB * S

    const = lambda b, ids: (0, 0)
    grid_spec = pltpu.PrefetchScalarGridSpec(
        num_scalar_prefetch=1,                      # token ids -> SMEM
        grid=(NB,),
        in_specs=[
            pl.BlockSpec(memory_space=pl.ANY),      # embedding table stays in HBM
            pl.BlockSpec((Kp, E), const),
            pl.BlockSpec((1, E), const),
            pl.BlockSpec((E, G4), const),
            pl.BlockSpec((1, G4), const),
            pl.BlockSpec((H, G4), const),
            pl.BlockSpec((1, H), const),
            pl.BlockSpec((1, 1), const),
        ],
        out_specs=pl.BlockSpec((None, S, BB, 1), lambda b, ids: (b, 0, 0, 0)),
        scratch_shapes=[
            pltpu.VMEM((N, Kp), jnp.float32),       # gathered embedding rows
            pltpu.VMEM((N, G4), jnp.float32),       # lane-dense gate pre-activations
            pltpu.SemaphoreType.DMA((1,)),
        ],
    )
    out = pl.pallas_call(
        _fused_kernel,
        out_shape=jax.ShapeDtypeStruct((NB, S, BB, 1), jnp.float32),
        grid_spec=grid_spec,
        compiler_params=pltpu.CompilerParams(
            dimension_semantics=("parallel",),
            vmem_limit_bytes=32 * 1024 * 1024,
        ),
    )(ids.astype(jnp.int32), table,
      params["w_emb"], params["b_emb"], params["wih"], params["b_lstm"],
      params["whh"], params["w_proj"], params["b_proj"])

    # (NB, S, BB, 1) -> (B, S): tiny output-layout glue fused by XLA.
    return out.reshape(NB, S, BB).transpose(0, 2, 1).reshape(B, S)


def prepare_params(raw):
    """Pad the 300-wide embedding to 384 lanes and cast MXU operands to bf16."""
    V, K = raw["emb_table"].shape
    Kp = ((K + 127) // 128) * 128
    table = jnp.zeros((V, Kp), jnp.float32).at[:, :K].set(raw["emb_table"])
    w_emb = jnp.zeros((Kp, raw["w_emb"].shape[1]), jnp.float32).at[:K, :].set(raw["w_emb"])
    return {
        "emb_table": table,                                  # f32, HBM resident
        "w_emb": w_emb.astype(jnp.bfloat16),
        "b_emb": raw["b_emb"].astype(jnp.float32),
        "wih": raw["wih_t"].astype(jnp.bfloat16),            # (E, 4H), gates i,f,g,o
        "b_lstm": raw["b_lstm"].astype(jnp.float32),         # b_ih + b_hh
        "whh": raw["whh_t"].astype(jnp.bfloat16),            # (H, 4H)
        "w_proj": raw["w_proj"].astype(jnp.float32),
        "b_proj": raw["b_proj"].astype(jnp.float32),
    }


# --------------------------- pure-JAX reference ------------------------------
def reference(ids, p):
    """Mirrors the kernel's mixed precision (bf16 MXU operands, f32 accum)."""
    B, S = ids.shape
    H = p["whh"].shape[0]
    emb = jnp.take(p["emb_table"], ids.reshape(-1), axis=0).astype(jnp.bfloat16)
    h1 = jax.nn.relu(
        jnp.dot(emb, p["w_emb"], preferred_element_type=jnp.float32) + p["b_emb"])
    g_in = (jnp.dot(h1.astype(jnp.bfloat16), p["wih"],
                    preferred_element_type=jnp.float32)
            + p["b_lstm"]).reshape(B, S, 4 * H)

    def step(carry, g_t):
        h, c = carry
        g = g_t + jnp.dot(h.astype(jnp.bfloat16), p["whh"],
                          preferred_element_type=jnp.float32)
        i_g, f_g, g_g, o_g = jnp.split(g, 4, axis=-1)
        c = jax.nn.sigmoid(f_g) * c + jax.nn.sigmoid(i_g) * jnp.tanh(g_g)
        h = jax.nn.sigmoid(o_g) * jnp.tanh(c)
        return (h, c), h

    h0 = jnp.zeros((B, H), jnp.float32)
    _, hs = lax.scan(step, (h0, h0), jnp.transpose(g_in, (1, 0, 2)))   # (S, B, H)
    logits = jnp.einsum("sbh,h->bs", hs, p["w_proj"][0]) + p["b_proj"][0, 0]
    return jax.nn.softmax(logits, axis=1)


if __name__ == "__main__":
    V, B, S, E, H = 64, 2, 8, 256, 32

    ks = jax.random.split(jax.random.PRNGKey(0), 8)
    raw = {
        "emb_table": jax.random.normal(ks[0], (V, NAVEC_EMB_DIM), jnp.float32) * 0.5,
        "w_emb": jax.random.normal(ks[1], (NAVEC_EMB_DIM, E), jnp.float32) * 0.05,
        "b_emb": jax.random.normal(ks[2], (1, E), jnp.float32) * 0.05,
        # PyTorch LSTM weights stored transposed: (E,4H)/(H,4H); gate order i,f,g,o
        "wih_t": jax.random.normal(ks[3], (E, 4 * H), jnp.float32) * 0.05,
        "whh_t": jax.random.normal(ks[4], (H, 4 * H), jnp.float32) * 0.05,
        "b_lstm": jax.random.normal(ks[5], (1, 4 * H), jnp.float32) * 0.05,
        "w_proj": jax.random.normal(ks[6], (1, H), jnp.float32) * 0.1,
        "b_proj": jnp.full((1, 1), 0.01, jnp.float32),
    }
    params = prepare_params(raw)
    ids = jax.random.randint(ks[7], (B, S), 0, V, dtype=jnp.int32)

    y = jax.block_until_ready(forward(ids, params))
    y_ref = jax.block_until_ready(reference(ids, params))

    assert y.shape == (B, S), y.shape
    assert jnp.allclose(y, y_ref, rtol=1e-2, atol=1e-4), (y, y_ref)
    print("KERNEL_OK")
</pallas_src>

<mosaic_0001>
module attributes {stable_mosaic.version = 11 : i64} {
  func.func @_fused_kernel(%arg0: i32, %arg1: memref<2x8xi32, #tpu.memory_space<smem>>, %arg2: memref<64x384xf32, #tpu.memory_space<any>>, %arg3: memref<384x256xbf16, #tpu.memory_space<vmem>>, %arg4: memref<1x256xf32, #tpu.memory_space<vmem>>, %arg5: memref<256x128xbf16, #tpu.memory_space<vmem>>, %arg6: memref<1x128xf32, #tpu.memory_space<vmem>>, %arg7: memref<32x128xbf16, #tpu.memory_space<vmem>>, %arg8: memref<1x32xf32, #tpu.memory_space<vmem>>, %arg9: memref<1x1xf32, #tpu.memory_space<vmem>>, %arg10: memref<1x8x1x1xf32, #tpu.memory_space<vmem>>, %arg11: memref<8x384xf32, #tpu.memory_space<vmem>>, %arg12: memref<8x128xf32, #tpu.memory_space<vmem>>, %arg13: memref<1x!tpu.dma_semaphore, #tpu.memory_space<semaphore_mem>>) attributes {dimension_semantics = [#tpu.dimension_semantics<parallel>], iteration_bounds = array<i64: 2>, scalar_prefetch = 1 : i64, scratch_operands = 3 : i64, tpu.core_type = #tpu.core_type<tc>, window_params = [{}, {pipeline_mode = #tpu.pipeline_mode<synchronous>, transform_indices = @transform_1, window_bounds = array<i64: 384, 256>}, {pipeline_mode = #tpu.pipeline_mode<synchronous>, transform_indices = @transform_2, window_bounds = array<i64: 1, 256>}, {pipeline_mode = #tpu.pipeline_mode<synchronous>, transform_indices = @transform_3, window_bounds = array<i64: 256, 128>}, {pipeline_mode = #tpu.pipeline_mode<synchronous>, transform_indices = @transform_4, window_bounds = array<i64: 1, 128>}, {pipeline_mode = #tpu.pipeline_mode<synchronous>, transform_indices = @transform_5, window_bounds = array<i64: 32, 128>}, {pipeline_mode = #tpu.pipeline_mode<synchronous>, transform_indices = @transform_6, window_bounds = array<i64: 1, 32>}, {pipeline_mode = #tpu.pipeline_mode<synchronous>, transform_indices = @transform_7, window_bounds = array<i64: 1, 1>}, {transform_indices = @transform_8, window_bounds = array<i64: 1, 8, 1, 1>}]} {
    %c1_i32 = arith.constant 1 : i32
    %0 = arith.muli %arg0, %c1_i32 : i32
    %c0_i32 = arith.constant 0 : i32
    %1 = arith.addi %0, %c0_i32 : i32
    %2 = arith.index_cast %1 : i32 to index
    %c0 = arith.constant 0 : index
    %3 = memref.load %arg1[%2, %c0] : memref<2x8xi32, #tpu.memory_space<smem>>
    %c0_i32_0 = arith.constant 0 : i32
    %c0_i32_1 = arith.constant 0 : i32
    %4 = tpu.memref_slice %arg2[%3, %c0_i32_1] : memref<64x384xf32, #tpu.memory_space<any>> -> memref<1x384xf32, #tpu.memory_space<any>>
    %c0_i32_2 = arith.constant 0 : i32
    %c0_i32_3 = arith.constant 0 : i32
    %5 = tpu.memref_slice %arg11[%c0_i32_2, %c0_i32_3] : memref<8x384xf32, #tpu.memory_space<vmem>> -> memref<1x384xf32, #tpu.memory_space<vmem>>
    %6 = tpu.memref_slice %arg13[%c0_i32_0] : memref<1x!tpu.dma_semaphore, #tpu.memory_space<semaphore_mem>> -> memref<1x!tpu.dma_semaphore, #tpu.memory_space<semaphore_mem>>
    %7 = tpu.memref_squeeze %6 : memref<1x!tpu.dma_semaphore, #tpu.memory_space<semaphore_mem>> -> memref<!tpu.dma_semaphore, #tpu.memory_space<semaphore_mem>>
    tpu.enqueue_dma source(%4 : memref<1x384xf32, #tpu.memory_space<any>>) target(%5 : memref<1x384xf32, #tpu.memory_space<vmem>>) target_semaphore(%7 : memref<!tpu.dma_semaphore, #tpu.memory_space<semaphore_mem>>)
    %c0_i32_4 = arith.constant 0 : i32
    %8 = arith.addi %0, %c0_i32_4 : i32
    %9 = arith.index_cast %8 : i32 to index
    %c1 = arith.constant 1 : index
    %10 = memref.load %arg1[%9, %c1] : memref<2x8xi32, #tpu.memory_space<smem>>
    %c0_i32_5 = arith.constant 0 : i32
    %c0_i32_6 = arith.constant 0 : i32
    %11 = tpu.memref_slice %arg2[%10, %c0_i32_6] : memref<64x384xf32, #tpu.memory_space<any>> -> memref<1x384xf32, #tpu.memory_space<any>>
    %c1_i32_7 = arith.constant 1 : i32
    %c0_i32_8 = arith.constant 0 : i32
    %12 = tpu.memref_slice %arg11[%c1_i32_7, %c0_i32_8] : memref<8x384xf32, #tpu.memory_space<vmem>> -> memref<1x384xf32, #tpu.memory_space<vmem>>
    %13 = tpu.memref_slice %arg13[%c0_i32_5] : memref<1x!tpu.dma_semaphore, #tpu.memory_space<semaphore_mem>> -> memref<1x!tpu.dma_semaphore, #tpu.memory_space<semaphore_mem>>
    %14 = tpu.memref_squeeze %13 : memref<1x!tpu.dma_semaphore, #tpu.memory_space<semaphore_mem>> -> memref<!tpu.dma_semaphore, #tpu.memory_space<semaphore_mem>>
    tpu.enqueue_dma source(%11 : memref<1x384xf32, #tpu.memory_space<any>>) target(%12 : memref<1x384xf32, #tpu.memory_space<vmem>>) target_semaphore(%14 : memref<!tpu.dma_semaphore, #tpu.memory_space<semaphore_mem>>)
    %c0_i32_9 = arith.constant 0 : i32
    %15 = arith.addi %0, %c0_i32_9 : i32
    %16 = arith.index_cast %15 : i32 to index
    %c2 = arith.constant 2 : index
    %17 = memref.load %arg1[%16, %c2] : memref<2x8xi32, #tpu.memory_space<smem>>
    %c0_i32_10 = arith.constant 0 : i32
    %c0_i32_11 = arith.constant 0 : i32
    %18 = tpu.memref_slice %arg2[%17, %c0_i32_11] : memref<64x384xf32, #tpu.memory_space<any>> -> memref<1x384xf32, #tpu.memory_space<any>>
    %c2_i32 = arith.constant 2 : i32
    %c0_i32_12 = arith.constant 0 : i32
    %19 = tpu.memref_slice %arg11[%c2_i32, %c0_i32_12] : memref<8x384xf32, #tpu.memory_space<vmem>> -> memref<1x384xf32, #tpu.memory_space<vmem>>
    %20 = tpu.memref_slice %arg13[%c0_i32_10] : memref<1x!tpu.dma_semaphore, #tpu.memory_space<semaphore_mem>> -> memref<1x!tpu.dma_semaphore, #tpu.memory_space<semaphore_mem>>
    %21 = tpu.memref_squeeze %20 : memref<1x!tpu.dma_semaphore, #tpu.memory_space<semaphore_mem>> -> memref<!tpu.dma_semaphore, #tpu.memory_space<semaphore_mem>>
    tpu.enqueue_dma source(%18 : memref<1x384xf32, #tpu.memory_space<any>>) target(%19 : memref<1x384xf32, #tpu.memory_space<vmem>>) target_semaphore(%21 : memref<!tpu.dma_semaphore, #tpu.memory_space<semaphore_mem>>)
    %c0_i32_13 = arith.constant 0 : i32
    %22 = arith.addi %0, %c0_i32_13 : i32
    %23 = arith.index_cast %22 : i32 to index
    %c3 = arith.constant 3 : index
    %24 = memref.load %arg1[%23, %c3] : memref<2x8xi32, #tpu.memory_space<smem>>
    %c0_i32_14 = arith.constant 0 : i32
    %c0_i32_15 = arith.constant 0 : i32
    %25 = tpu.memref_slice %arg2[%24, %c0_i32_15] : memref<64x384xf32, #tpu.memory_space<any>> -> memref<1x384xf32, #tpu.memory_space<any>>
    %c3_i32 = arith.constant 3 : i32
    %c0_i32_16 = arith.constant 0 : i32
    %26 = tpu.memref_slice %arg11[%c3_i32, %c0_i32_16] : memref<8x384xf32, #tpu.memory_space<vmem>> -> memref<1x384xf32, #tpu.memory_space<vmem>>
    %27 = tpu.memref_slice %arg13[%c0_i32_14] : memref<1x!tpu.dma_semaphore, #tpu.memory_space<semaphore_mem>> -> memref<1x!tpu.dma_semaphore, #tpu.memory_space<semaphore_mem>>
    %28 = tpu.memref_squeeze %27 : memref<1x!tpu.dma_semaphore, #tpu.memory_space<semaphore_mem>> -> memref<!tpu.dma_semaphore, #tpu.memory_space<semaphore_mem>>
    tpu.enqueue_dma source(%25 : memref<1x384xf32, #tpu.memory_space<any>>) target(%26 : memref<1x384xf32, #tpu.memory_space<vmem>>) target_semaphore(%28 : memref<!tpu.dma_semaphore, #tpu.memory_space<semaphore_mem>>)
    %c0_i32_17 = arith.constant 0 : i32
    %29 = arith.addi %0, %c0_i32_17 : i32
    %30 = arith.index_cast %29 : i32 to index
    %c4 = arith.constant 4 : index
    %31 = memref.load %arg1[%30, %c4] : memref<2x8xi32, #tpu.memory_space<smem>>
    %c0_i32_18 = arith.constant 0 : i32
    %c0_i32_19 = arith.constant 0 : i32
    %32 = tpu.memref_slice %arg2[%31, %c0_i32_19] : memref<64x384xf32, #tpu.memory_space<any>> -> memref<1x384xf32, #tpu.memory_space<any>>
    %c4_i32 = arith.constant 4 : i32
    %c0_i32_20 = arith.constant 0 : i32
    %33 = tpu.memref_slice %arg11[%c4_i32, %c0_i32_20] : memref<8x384xf32, #tpu.memory_space<vmem>> -> memref<1x384xf32, #tpu.memory_space<vmem>>
    %34 = tpu.memref_slice %arg13[%c0_i32_18] : memref<1x!tpu.dma_semaphore, #tpu.memory_space<semaphore_mem>> -> memref<1x!tpu.dma_semaphore, #tpu.memory_space<semaphore_mem>>
    %35 = tpu.memref_squeeze %34 : memref<1x!tpu.dma_semaphore, #tpu.memory_space<semaphore_mem>> -> memref<!tpu.dma_semaphore, #tpu.memory_space<semaphore_mem>>
    tpu.enqueue_dma source(%32 : memref<1x384xf32, #tpu.memory_space<any>>) target(%33 : memref<1x384xf32, #tpu.memory_space<vmem>>) target_semaphore(%35 : memref<!tpu.dma_semaphore, #tpu.memory_space<semaphore_mem>>)
    %c0_i32_21 = arith.constant 0 : i32
    %36 = arith.addi %0, %c0_i32_21 : i32
    %37 = arith.index_cast %36 : i32 to index
    %c5 = arith.constant 5 : index
    %38 = memref.load %arg1[%37, %c5] : memref<2x8xi32, #tpu.memory_space<smem>>
    %c0_i32_22 = arith.constant 0 : i32
    %c0_i32_23 = arith.constant 0 : i32
    %39 = tpu.memref_slice %arg2[%38, %c0_i32_23] : memref<64x384xf32, #tpu.memory_space<any>> -> memref<1x384xf32, #tpu.memory_space<any>>
    %c5_i32 = arith.constant 5 : i32
    %c0_i32_24 = arith.constant 0 : i32
    %40 = tpu.memref_slice %arg11[%c5_i32, %c0_i32_24] : memref<8x384xf32, #tpu.memory_space<vmem>> -> memref<1x384xf32, #tpu.memory_space<vmem>>
    %41 = tpu.memref_slice %arg13[%c0_i32_22] : memref<1x!tpu.dma_semaphore, #tpu.memory_space<semaphore_mem>> -> memref<1x!tpu.dma_semaphore, #tpu.memory_space<semaphore_mem>>
    %42 = tpu.memref_squeeze %41 : memref<1x!tpu.dma_semaphore, #tpu.memory_space<semaphore_mem>> -> memref<!tpu.dma_semaphore, #tpu.memory_space<semaphore_mem>>
    tpu.enqueue_dma source(%39 : memref<1x384xf32, #tpu.memory_space<any>>) target(%40 : memref<1x384xf32, #tpu.memory_space<vmem>>) target_semaphore(%42 : memref<!tpu.dma_semaphore, #tpu.memory_space<semaphore_mem>>)
    %c0_i32_25 = arith.constant 0 : i32
    %43 = arith.addi %0, %c0_i32_25 : i32
    %44 = arith.index_cast %43 : i32 to index
    %c6 = arith.constant 6 : index
    %45 = memref.load %arg1[%44, %c6] : memref<2x8xi32, #tpu.memory_space<smem>>
    %c0_i32_26 = arith.constant 0 : i32
    %c0_i32_27 = arith.constant 0 : i32
    %46 = tpu.memref_slice %arg2[%45, %c0_i32_27] : memref<64x384xf32, #tpu.memory_space<any>> -> memref<1x384xf32, #tpu.memory_space<any>>
    %c6_i32 = arith.constant 6 : i32
    %c0_i32_28 = arith.constant 0 : i32
    %47 = tpu.memref_slice %arg11[%c6_i32, %c0_i32_28] : memref<8x384xf32, #tpu.memory_space<vmem>> -> memref<1x384xf32, #tpu.memory_space<vmem>>
    %48 = tpu.memref_slice %arg13[%c0_i32_26] : memref<1x!tpu.dma_semaphore, #tpu.memory_space<semaphore_mem>> -> memref<1x!tpu.dma_semaphore, #tpu.memory_space<semaphore_mem>>
    %49 = tpu.memref_squeeze %48 : memref<1x!tpu.dma_semaphore, #tpu.memory_space<semaphore_mem>> -> memref<!tpu.dma_semaphore, #tpu.memory_space<semaphore_mem>>
    tpu.enqueue_dma source(%46 : memref<1x384xf32, #tpu.memory_space<any>>) target(%47 : memref<1x384xf32, #tpu.memory_space<vmem>>) target_semaphore(%49 : memref<!tpu.dma_semaphore, #tpu.memory_space<semaphore_mem>>)
    %c0_i32_29 = arith.constant 0 : i32
    %50 = arith.addi %0, %c0_i32_29 : i32
    %51 = arith.index_cast %50 : i32 to index
    %c7 = arith.constant 7 : index
    %52 = memref.load %arg1[%51, %c7] : memref<2x8xi32, #tpu.memory_space<smem>>
    %c0_i32_30 = arith.constant 0 : i32
    %c0_i32_31 = arith.constant 0 : i32
    %53 = tpu.memref_slice %arg2[%52, %c0_i32_31] : memref<64x384xf32, #tpu.memory_space<any>> -> memref<1x384xf32, #tpu.memory_space<any>>
    %c7_i32 = arith.constant 7 : i32
    %c0_i32_32 = arith.constant 0 : i32
    %54 = tpu.memref_slice %arg11[%c7_i32, %c0_i32_32] : memref<8x384xf32, #tpu.memory_space<vmem>> -> memref<1x384xf32, #tpu.memory_space<vmem>>
    %55 = tpu.memref_slice %arg13[%c0_i32_30] : memref<1x!tpu.dma_semaphore, #tpu.memory_space<semaphore_mem>> -> memref<1x!tpu.dma_semaphore, #tpu.memory_space<semaphore_mem>>
    %56 = tpu.memref_squeeze %55 : memref<1x!tpu.dma_semaphore, #tpu.memory_space<semaphore_mem>> -> memref<!tpu.dma_semaphore, #tpu.memory_space<semaphore_mem>>
    tpu.enqueue_dma source(%53 : memref<1x384xf32, #tpu.memory_space<any>>) target(%54 : memref<1x384xf32, #tpu.memory_space<vmem>>) target_semaphore(%56 : memref<!tpu.dma_semaphore, #tpu.memory_space<semaphore_mem>>)
    %c0_i32_33 = arith.constant 0 : i32
    %57 = arith.addi %0, %c0_i32_33 : i32
    %58 = arith.index_cast %57 : i32 to index
    %c0_34 = arith.constant 0 : index
    %59 = memref.load %arg1[%58, %c0_34] : memref<2x8xi32, #tpu.memory_space<smem>>
    %c0_i32_35 = arith.constant 0 : i32
    %c0_i32_36 = arith.constant 0 : i32
    %60 = tpu.memref_slice %arg2[%59, %c0_i32_36] : memref<64x384xf32, #tpu.memory_space<any>> -> memref<1x384xf32, #tpu.memory_space<any>>
    %c0_i32_37 = arith.constant 0 : i32
    %c0_i32_38 = arith.constant 0 : i32
    %61 = tpu.memref_slice %arg11[%c0_i32_37, %c0_i32_38] : memref<8x384xf32, #tpu.memory_space<vmem>> -> memref<1x384xf32, #tpu.memory_space<vmem>>
    %62 = tpu.memref_slice %arg13[%c0_i32_35] : memref<1x!tpu.dma_semaphore, #tpu.memory_space<semaphore_mem>> -> memref<1x!tpu.dma_semaphore, #tpu.memory_space<semaphore_mem>>
    %63 = tpu.memref_squeeze %62 : memref<1x!tpu.dma_semaphore, #tpu.memory_space<semaphore_mem>> -> memref<!tpu.dma_semaphore, #tpu.memory_space<semaphore_mem>>
    tpu.wait_dma2 semaphore(%63 : memref<!tpu.dma_semaphore, #tpu.memory_space<semaphore_mem>>) src(%60 : memref<1x384xf32, #tpu.memory_space<any>>) dst(%61 : memref<1x384xf32, #tpu.memory_space<vmem>>)
    %c0_i32_39 = arith.constant 0 : i32
    %64 = arith.addi %0, %c0_i32_39 : i32
    %65 = arith.index_cast %64 : i32 to index
    %c1_40 = arith.constant 1 : index
    %66 = memref.load %arg1[%65, %c1_40] : memref<2x8xi32, #tpu.memory_space<smem>>
    %c0_i32_41 = arith.constant 0 : i32
    %c0_i32_42 = arith.constant 0 : i32
    %67 = tpu.memref_slice %arg2[%66, %c0_i32_42] : memref<64x384xf32, #tpu.memory_space<any>> -> memref<1x384xf32, #tpu.memory_space<any>>
    %c1_i32_43 = arith.constant 1 : i32
    %c0_i32_44 = arith.constant 0 : i32
    %68 = tpu.memref_slice %arg11[%c1_i32_43, %c0_i32_44] : memref<8x384xf32, #tpu.memory_space<vmem>> -> memref<1x384xf32, #tpu.memory_space<vmem>>
    %69 = tpu.memref_slice %arg13[%c0_i32_41] : memref<1x!tpu.dma_semaphore, #tpu.memory_space<semaphore_mem>> -> memref<1x!tpu.dma_semaphore, #tpu.memory_space<semaphore_mem>>
    %70 = tpu.memref_squeeze %69 : memref<1x!tpu.dma_semaphore, #tpu.memory_space<semaphore_mem>> -> memref<!tpu.dma_semaphore, #tpu.memory_space<semaphore_mem>>
    tpu.wait_dma2 semaphore(%70 : memref<!tpu.dma_semaphore, #tpu.memory_space<semaphore_mem>>) src(%67 : memref<1x384xf32, #tpu.memory_space<any>>) dst(%68 : memref<1x384xf32, #tpu.memory_space<vmem>>)
    %c0_i32_45 = arith.constant 0 : i32
    %71 = arith.addi %0, %c0_i32_45 : i32
    %72 = arith.index_cast %71 : i32 to index
    %c2_46 = arith.constant 2 : index
    %73 = memref.load %arg1[%72, %c2_46] : memref<2x8xi32, #tpu.memory_space<smem>>
    %c0_i32_47 = arith.constant 0 : i32
    %c0_i32_48 = arith.constant 0 : i32
    %74 = tpu.memref_slice %arg2[%73, %c0_i32_48] : memref<64x384xf32, #tpu.memory_space<any>> -> memref<1x384xf32, #tpu.memory_space<any>>
    %c2_i32_49 = arith.constant 2 : i32
    %c0_i32_50 = arith.constant 0 : i32
    %75 = tpu.memref_slice %arg11[%c2_i32_49, %c0_i32_50] : memref<8x384xf32, #tpu.memory_space<vmem>> -> memref<1x384xf32, #tpu.memory_space<vmem>>
    %76 = tpu.memref_slice %arg13[%c0_i32_47] : memref<1x!tpu.dma_semaphore, #tpu.memory_space<semaphore_mem>> -> memref<1x!tpu.dma_semaphore, #tpu.memory_space<semaphore_mem>>
    %77 = tpu.memref_squeeze %76 : memref<1x!tpu.dma_semaphore, #tpu.memory_space<semaphore_mem>> -> memref<!tpu.dma_semaphore, #tpu.memory_space<semaphore_mem>>
    tpu.wait_dma2 semaphore(%77 : memref<!tpu.dma_semaphore, #tpu.memory_space<semaphore_mem>>) src(%74 : memref<1x384xf32, #tpu.memory_space<any>>) dst(%75 : memref<1x384xf32, #tpu.memory_space<vmem>>)
    %c0_i32_51 = arith.constant 0 : i32
    %78 = arith.addi %0, %c0_i32_51 : i32
    %79 = arith.index_cast %78 : i32 to index
    %c3_52 = arith.constant 3 : index
    %80 = memref.load %arg1[%79, %c3_52] : memref<2x8xi32, #tpu.memory_space<smem>>
    %c0_i32_53 = arith.constant 0 : i32
    %c0_i32_54 = arith.constant 0 : i32
    %81 = tpu.memref_slice %arg2[%80, %c0_i32_54] : memref<64x384xf32, #tpu.memory_space<any>> -> memref<1x384xf32, #tpu.memory_space<any>>
    %c3_i32_55 = arith.constant 3 : i32
    %c0_i32_56 = arith.constant 0 : i32
    %82 = tpu.memref_slice %arg11[%c3_i32_55, %c0_i32_56] : memref<8x384xf32, #tpu.memory_space<vmem>> -> memref<1x384xf32, #tpu.memory_space<vmem>>
    %83 = tpu.memref_slice %arg13[%c0_i32_53] : memref<1x!tpu.dma_semaphore, #tpu.memory_space<semaphore_mem>> -> memref<1x!tpu.dma_semaphore, #tpu.memory_space<semaphore_mem>>
    %84 = tpu.memref_squeeze %83 : memref<1x!tpu.dma_semaphore, #tpu.memory_space<semaphore_mem>> -> memref<!tpu.dma_semaphore, #tpu.memory_space<semaphore_mem>>
    tpu.wait_dma2 semaphore(%84 : memref<!tpu.dma_semaphore, #tpu.memory_space<semaphore_mem>>) src(%81 : memref<1x384xf32, #tpu.memory_space<any>>) dst(%82 : memref<1x384xf32, #tpu.memory_space<vmem>>)
    %c0_i32_57 = arith.constant 0 : i32
    %85 = arith.addi %0, %c0_i32_57 : i32
    %86 = arith.index_cast %85 : i32 to index
    %c4_58 = arith.constant 4 : index
    %87 = memref.load %arg1[%86, %c4_58] : memref<2x8xi32, #tpu.memory_space<smem>>
    %c0_i32_59 = arith.constant 0 : i32
    %c0_i32_60 = arith.constant 0 : i32
    %88 = tpu.memref_slice %arg2[%87, %c0_i32_60] : memref<64x384xf32, #tpu.memory_space<any>> -> memref<1x384xf32, #tpu.memory_space<any>>
    %c4_i32_61 = arith.constant 4 : i32
    %c0_i32_62 = arith.constant 0 : i32
    %89 = tpu.memref_slice %arg11[%c4_i32_61, %c0_i32_62] : memref<8x384xf32, #tpu.memory_space<vmem>> -> memref<1x384xf32, #tpu.memory_space<vmem>>
    %90 = tpu.memref_slice %arg13[%c0_i32_59] : memref<1x!tpu.dma_semaphore, #tpu.memory_space<semaphore_mem>> -> memref<1x!tpu.dma_semaphore, #tpu.memory_space<semaphore_mem>>
    %91 = tpu.memref_squeeze %90 : memref<1x!tpu.dma_semaphore, #tpu.memory_space<semaphore_mem>> -> memref<!tpu.dma_semaphore, #tpu.memory_space<semaphore_mem>>
    tpu.wait_dma2 semaphore(%91 : memref<!tpu.dma_semaphore, #tpu.memory_space<semaphore_mem>>) src(%88 : memref<1x384xf32, #tpu.memory_space<any>>) dst(%89 : memref<1x384xf32, #tpu.memory_space<vmem>>)
    %c0_i32_63 = arith.constant 0 : i32
    %92 = arith.addi %0, %c0_i32_63 : i32
    %93 = arith.index_cast %92 : i32 to index
    %c5_64 = arith.constant 5 : index
    %94 = memref.load %arg1[%93, %c5_64] : memref<2x8xi32, #tpu.memory_space<smem>>
    %c0_i32_65 = arith.constant 0 : i32
    %c0_i32_66 = arith.constant 0 : i32
    %95 = tpu.memref_slice %arg2[%94, %c0_i32_66] : memref<64x384xf32, #tpu.memory_space<any>> -> memref<1x384xf32, #tpu.memory_space<any>>
    %c5_i32_67 = arith.constant 5 : i32
    %c0_i32_68 = arith.constant 0 : i32
    %96 = tpu.memref_slice %arg11[%c5_i32_67, %c0_i32_68] : memref<8x384xf32, #tpu.memory_space<vmem>> -> memref<1x384xf32, #tpu.memory_space<vmem>>
    %97 = tpu.memref_slice %arg13[%c0_i32_65] : memref<1x!tpu.dma_semaphore, #tpu.memory_space<semaphore_mem>> -> memref<1x!tpu.dma_semaphore, #tpu.memory_space<semaphore_mem>>
    %98 = tpu.memref_squeeze %97 : memref<1x!tpu.dma_semaphore, #tpu.memory_space<semaphore_mem>> -> memref<!tpu.dma_semaphore, #tpu.memory_space<semaphore_mem>>
    tpu.wait_dma2 semaphore(%98 : memref<!tpu.dma_semaphore, #tpu.memory_space<semaphore_mem>>) src(%95 : memref<1x384xf32, #tpu.memory_space<any>>) dst(%96 : memref<1x384xf32, #tpu.memory_space<vmem>>)
    %c0_i32_69 = arith.constant 0 : i32
    %99 = arith.addi %0, %c0_i32_69 : i32
    %100 = arith.index_cast %99 : i32 to index
    %c6_70 = arith.constant 6 : index
    %101 = memref.load %arg1[%100, %c6_70] : memref<2x8xi32, #tpu.memory_space<smem>>
    %c0_i32_71 = arith.constant 0 : i32
    %c0_i32_72 = arith.constant 0 : i32
    %102 = tpu.memref_slice %arg2[%101, %c0_i32_72] : memref<64x384xf32, #tpu.memory_space<any>> -> memref<1x384xf32, #tpu.memory_space<any>>
    %c6_i32_73 = arith.constant 6 : i32
    %c0_i32_74 = arith.constant 0 : i32
    %103 = tpu.memref_slice %arg11[%c6_i32_73, %c0_i32_74] : memref<8x384xf32, #tpu.memory_space<vmem>> -> memref<1x384xf32, #tpu.memory_space<vmem>>
    %104 = tpu.memref_slice %arg13[%c0_i32_71] : memref<1x!tpu.dma_semaphore, #tpu.memory_space<semaphore_mem>> -> memref<1x!tpu.dma_semaphore, #tpu.memory_space<semaphore_mem>>
    %105 = tpu.memref_squeeze %104 : memref<1x!tpu.dma_semaphore, #tpu.memory_space<semaphore_mem>> -> memref<!tpu.dma_semaphore, #tpu.memory_space<semaphore_mem>>
    tpu.wait_dma2 semaphore(%105 : memref<!tpu.dma_semaphore, #tpu.memory_space<semaphore_mem>>) src(%102 : memref<1x384xf32, #tpu.memory_space<any>>) dst(%103 : memref<1x384xf32, #tpu.memory_space<vmem>>)
    %c0_i32_75 = arith.constant 0 : i32
    %106 = arith.addi %0, %c0_i32_75 : i32
    %107 = arith.index_cast %106 : i32 to index
    %c7_76 = arith.constant 7 : index
    %108 = memref.load %arg1[%107, %c7_76] : memref<2x8xi32, #tpu.memory_space<smem>>
    %c0_i32_77 = arith.constant 0 : i32
    %c0_i32_78 = arith.constant 0 : i32
    %109 = tpu.memref_slice %arg2[%108, %c0_i32_78] : memref<64x384xf32, #tpu.memory_space<any>> -> memref<1x384xf32, #tpu.memory_space<any>>
    %c7_i32_79 = arith.constant 7 : i32
    %c0_i32_80 = arith.constant 0 : i32
    %110 = tpu.memref_slice %arg11[%c7_i32_79, %c0_i32_80] : memref<8x384xf32, #tpu.memory_space<vmem>> -> memref<1x384xf32, #tpu.memory_space<vmem>>
    %111 = tpu.memref_slice %arg13[%c0_i32_77] : memref<1x!tpu.dma_semaphore, #tpu.memory_space<semaphore_mem>> -> memref<1x!tpu.dma_semaphore, #tpu.memory_space<semaphore_mem>>
    %112 = tpu.memref_squeeze %111 : memref<1x!tpu.dma_semaphore, #tpu.memory_space<semaphore_mem>> -> memref<!tpu.dma_semaphore, #tpu.memory_space<semaphore_mem>>
    tpu.wait_dma2 semaphore(%112 : memref<!tpu.dma_semaphore, #tpu.memory_space<semaphore_mem>>) src(%109 : memref<1x384xf32, #tpu.memory_space<any>>) dst(%110 : memref<1x384xf32, #tpu.memory_space<vmem>>)
    %c0_81 = arith.constant 0 : index
    %c0_82 = arith.constant 0 : index
    %113 = vector.load %arg11[%c0_81, %c0_82] : memref<8x384xf32, #tpu.memory_space<vmem>>, vector<8x384xf32>
    %114 = arith.truncf %113 : vector<8x384xf32> to vector<8x384xbf16>
    %c0_83 = arith.constant 0 : index
    %c0_84 = arith.constant 0 : index
    %115 = vector.load %arg3[%c0_83, %c0_84] : memref<384x256xbf16, #tpu.memory_space<vmem>>, vector<384x256xbf16>
    %cst = arith.constant dense<0.000000e+00> : vector<8x256xf32>
    %116 = tpu.matmul %114, %115, %cst {dimension_numbers = #tpu.dot_dimension_numbers<[1], [0], [0], [1], [0, 0, 1, 1], [], []>} : vector<8x384xbf16>, vector<384x256xbf16>, vector<8x256xf32> -> vector<8x256xf32>
    %c0_85 = arith.constant 0 : index
    %c0_86 = arith.constant 0 : index
    %117 = vector.load %arg4[%c0_85, %c0_86] : memref<1x256xf32, #tpu.memory_space<vmem>>, vector<1x256xf32>
    %118 = vector.broadcast %117 : vector<1x256xf32> to vector<8x256xf32>
    %119 = arith.addf %116, %118 : vector<8x256xf32>
    %cst_87 = arith.constant 0.000000e+00 : f32
    %120 = vector.broadcast %cst_87 : f32 to vector<8x256xf32>
    %121 = arith.maximumf %119, %120 : vector<8x256xf32>
    %122 = arith.truncf %121 : vector<8x256xf32> to vector<8x256xbf16>
    %c0_88 = arith.constant 0 : index
    %c0_89 = arith.constant 0 : index
    %123 = vector.load %arg5[%c0_88, %c0_89] : memref<256x128xbf16, #tpu.memory_space<vmem>>, vector<256x128xbf16>
    %cst_90 = arith.constant dense<0.000000e+00> : vector<8x128xf32>
    %124 = tpu.matmul %122, %123, %cst_90 {dimension_numbers = #tpu.dot_dimension_numbers<[1], [0], [0], [1], [0, 0, 1, 1], [], []>} : vector<8x256xbf16>, vector<256x128xbf16>, vector<8x128xf32> -> vector<8x128xf32>
    %c0_91 = arith.constant 0 : index
    %c0_92 = arith.constant 0 : index
    %125 = vector.load %arg6[%c0_91, %c0_92] : memref<1x128xf32, #tpu.memory_space<vmem>>, vector<1x128xf32>
    %126 = vector.broadcast %125 : vector<1x128xf32> to vector<8x128xf32>
    %127 = arith.addf %124, %126 : vector<8x128xf32>
    %c0_93 = arith.constant 0 : index
    %c0_94 = arith.constant 0 : index
    %128 = vector.load %arg12[%c0_93, %c0_94] : memref<8x128xf32, #tpu.memory_space<vmem>>, vector<8x128xf32>
    tpu.vector_store %arg12[%c0_93, %c0_94], %127 {strides = array<i32>} : memref<8x128xf32, #tpu.memory_space<vmem>>, vector<8x128xf32>,
    %c0_95 = arith.constant 0 : index
    %c0_96 = arith.constant 0 : index
    %129 = vector.load %arg7[%c0_95, %c0_96] : memref<32x128xbf16, #tpu.memory_space<vmem>>, vector<32x128xbf16>
    %c0_97 = arith.constant 0 : index
    %c0_98 = arith.constant 0 : index
    %130 = vector.load %arg8[%c0_97, %c0_98] : memref<1x32xf32, #tpu.memory_space<vmem>>, vector<1x32xf32>
    %c0_99 = arith.constant 0 : index
    %c0_100 = arith.constant 0 : index
    %131 = vector.load %arg9[%c0_99, %c0_100] : memref<1x1xf32, #tpu.memory_space<vmem>>, vector<1x1xf32>
    %132 = vector.extract %131[0, 0] : f32 from vector<1x1xf32>
    %cst_101 = arith.constant 0.000000e+00 : f32
    %133 = vector.broadcast %cst_101 : f32 to vector<1x32xf32>
    %cst_102 = arith.constant 0.000000e+00 : f32
    %134 = vector.broadcast %cst_102 : f32 to vector<1x32xf32>
    %c0_103 = arith.constant 0 : index
    %c0_104 = arith.constant 0 : index
    %135 = vector.load %arg12[%c0_103, %c0_104] : memref<8x128xf32, #tpu.memory_space<vmem>>, vector<1x128xf32>
    %136 = arith.truncf %133 : vector<1x32xf32> to vector<1x32xbf16>
    %cst_105 = arith.constant dense<0.000000e+00> : vector<1x128xf32>
    %137 = tpu.matmul %136, %129, %cst_105 {dimension_numbers = #tpu.dot_dimension_numbers<[1], [0], [0], [1], [0, 0, 1, 1], [], []>} : vector<1x32xbf16>, vector<32x128xbf16>, vector<1x128xf32> -> vector<1x128xf32>
    %138 = arith.addf %135, %137 : vector<1x128xf32>
    %139 = vector.extract_strided_slice %138 {offsets = [0, 0], sizes = [1, 32], strides = [1, 1]} : vector<1x128xf32> to vector<1x32xf32>
    %140 = arith.negf %139 : vector<1x32xf32>
    %141 = math.exp %140 : vector<1x32xf32>
    %cst_106 = arith.constant 1.000000e+00 : f32
    %142 = vector.broadcast %cst_106 : f32 to vector<1x32xf32>
    %143 = arith.addf %142, %141 : vector<1x32xf32>
    %144 = arith.divf %142, %143 : vector<1x32xf32>
    %145 = vector.extract_strided_slice %138 {offsets = [0, 32], sizes = [1, 32], strides = [1, 1]} : vector<1x128xf32> to vector<1x32xf32>
    %146 = arith.negf %145 : vector<1x32xf32>
    %147 = math.exp %146 : vector<1x32xf32>
    %cst_107 = arith.constant 1.000000e+00 : f32
    %148 = vector.broadcast %cst_107 : f32 to vector<1x32xf32>
    %149 = arith.addf %148, %147 : vector<1x32xf32>
    %150 = arith.divf %148, %149 : vector<1x32xf32>
    %151 = vector.extract_strided_slice %138 {offsets = [0, 64], sizes = [1, 32], strides = [1, 1]} : vector<1x128xf32> to vector<1x32xf32>
    %152 = math.tanh %151 : vector<1x32xf32>
    %153 = vector.extract_strided_slice %138 {offsets = [0, 96], sizes = [1, 32], strides = [1, 1]} : vector<1x128xf32> to vector<1x32xf32>
    %154 = arith.negf %153 : vector<1x32xf32>
    %155 = math.exp %154 : vector<1x32xf32>
    %cst_108 = arith.constant 1.000000e+00 : f32
    %156 = vector.broadcast %cst_108 : f32 to vector<1x32xf32>
    %157 = arith.addf %156, %155 : vector<1x32xf32>
    %158 = arith.divf %156, %157 : vector<1x32xf32>
    %159 = arith.mulf %150, %134 : vector<1x32xf32>
    %160 = arith.mulf %144, %152 : vector<1x32xf32>
    %161 = arith.addf %159, %160 : vector<1x32xf32>
    %162 = math.tanh %161 : vector<1x32xf32>
    %163 = arith.mulf %158, %162 : vector<1x32xf32>
    %164 = arith.mulf %163, %130 : vector<1x32xf32>
    %cst_109 = arith.constant dense<0.000000e+00> : vector<1xf32>
    %165 = vector.multi_reduction <add>, %164, %cst_109 [1] : vector<1x32xf32> to vector<1xf32>
    %166 = vector.shape_cast %165 : vector<1xf32> to vector<1x1xf32>
    %167 = vector.broadcast %132 : f32 to vector<1x1xf32>
    %168 = arith.addf %166, %167 : vector<1x1xf32>
    %c0_110 = arith.constant 0 : index
    %c0_111 = arith.constant 0 : index
    %c0_112 = arith.constant 0 : index
    %c0_113 = arith.constant 0 : index
    %169 = vector.load %arg10[%c0_110, %c0_111, %c0_112, %c0_113] : memref<1x8x1x1xf32, #tpu.memory_space<vmem>>, vector<1x1x1x1xf32>
    %170 = vector.shape_cast %169 : vector<1x1x1x1xf32> to vector<1x1xf32>
    %171 = vector.shape_cast %168 : vector<1x1xf32> to vector<1x1x1x1xf32>
    tpu.vector_store %arg10[%c0_110, %c0_111, %c0_112, %c0_113], %171 {strides = array<i32>} : memref<1x8x1x1xf32, #tpu.memory_space<vmem>>, vector<1x1x1x1xf32>,
    %c1_114 = arith.constant 1 : index
    %c0_115 = arith.constant 0 : index
    %172 = vector.load %arg12[%c1_114, %c0_115] : memref<8x128xf32, #tpu.memory_space<vmem>>, vector<1x128xf32>
    %173 = arith.truncf %163 : vector<1x32xf32> to vector<1x32xbf16>
    %cst_116 = arith.constant dense<0.000000e+00> : vector<1x128xf32>
    %174 = tpu.matmul %173, %129, %cst_116 {dimension_numbers = #tpu.dot_dimension_numbers<[1], [0], [0], [1], [0, 0, 1, 1], [], []>} : vector<1x32xbf16>, vector<32x128xbf16>, vector<1x128xf32> -> vector<1x128xf32>
    %175 = arith.addf %172, %174 : vector<1x128xf32>
    %176 = vector.extract_strided_slice %175 {offsets = [0, 0], sizes = [1, 32], strides = [1, 1]} : vector<1x128xf32> to vector<1x32xf32>
    %177 = arith.negf %176 : vector<1x32xf32>
    %178 = math.exp %177 : vector<1x32xf32>
    %cst_117 = arith.constant 1.000000e+00 : f32
    %179 = vector.broadcast %cst_117 : f32 to vector<1x32xf32>
    %180 = arith.addf %179, %178 : vector<1x32xf32>
    %181 = arith.divf %179, %180 : vector<1x32xf32>
    %182 = vector.extract_strided_slice %175 {offsets = [0, 32], sizes = [1, 32], strides = [1, 1]} : vector<1x128xf32> to vector<1x32xf32>
    %183 = arith.negf %182 : vector<1x32xf32>
    %184 = math.exp %183 : vector<1x32xf32>
    %cst_118 = arith.constant 1.000000e+00 : f32
    %185 = vector.broadcast %cst_118 : f32 to vector<1x32xf32>
    %186 = arith.addf %185, %184 : vector<1x32xf32>
    %187 = arith.divf %185, %186 : vector<1x32xf32>
    %188 = vector.extract_strided_slice %175 {offsets = [0, 64], sizes = [1, 32], strides = [1, 1]} : vector<1x128xf32> to vector<1x32xf32>
    %189 = math.tanh %188 : vector<1x32xf32>
    %190 = vector.extract_strided_slice %175 {offsets = [0, 96], sizes = [1, 32], strides = [1, 1]} : vector<1x128xf32> to vector<1x32xf32>
    %191 = arith.negf %190 : vector<1x32xf32>
    %192 = math.exp %191 : vector<1x32xf32>
    %cst_119 = arith.constant 1.000000e+00 : f32
    %193 = vector.broadcast %cst_119 : f32 to vector<1x32xf32>
    %194 = arith.addf %193, %192 : vector<1x32xf32>
    %195 = arith.divf %193, %194 : vector<1x32xf32>
    %196 = arith.mulf %187, %161 : vector<1x32xf32>
    %197 = arith.mulf %181, %189 : vector<1x32xf32>
    %198 = arith.addf %196, %197 : vector<1x32xf32>
    %199 = math.tanh %198 : vector<1x32xf32>
    %200 = arith.mulf %195, %199 : vector<1x32xf32>
    %201 = arith.mulf %200, %130 : vector<1x32xf32>
    %cst_120 = arith.constant dense<0.000000e+00> : vector<1xf32>
    %202 = vector.multi_reduction <add>, %201, %cst_120 [1] : vector<1x32xf32> to vector<1xf32>
    %203 = vector.shape_cast %202 : vector<1xf32> to vector<1x1xf32>
    %204 = vector.broadcast %132 : f32 to vector<1x1xf32>
    %205 = arith.addf %203, %204 : vector<1x1xf32>
    %c0_121 = arith.constant 0 : index
    %c1_122 = arith.constant 1 : index
    %c0_123 = arith.constant 0 : index
    %c0_124 = arith.constant 0 : index
    %206 = vector.load %arg10[%c0_121, %c1_122, %c0_123, %c0_124] : memref<1x8x1x1xf32, #tpu.memory_space<vmem>>, vector<1x1x1x1xf32>
    %207 = vector.shape_cast %206 : vector<1x1x1x1xf32> to vector<1x1xf32>
    %208 = vector.shape_cast %205 : vector<1x1xf32> to vector<1x1x1x1xf32>
    tpu.vector_store %arg10[%c0_121, %c1_122, %c0_123, %c0_124], %208 {strides = array<i32>} : memref<1x8x1x1xf32, #tpu.memory_space<vmem>>, vector<1x1x1x1xf32>,
    %c2_125 = arith.constant 2 : index
    %c0_126 = arith.constant 0 : index
    %209 = vector.load %arg12[%c2_125, %c0_126] : memref<8x128xf32, #tpu.memory_space<vmem>>, vector<1x128xf32>
    %210 = arith.truncf %200 : vector<1x32xf32> to vector<1x32xbf16>
    %cst_127 = arith.constant dense<0.000000e+00> : vector<1x128xf32>
    %211 = tpu.matmul %210, %129, %cst_127 {dimension_numbers = #tpu.dot_dimension_numbers<[1], [0], [0], [1], [0, 0, 1, 1], [], []>} : vector<1x32xbf16>, vector<32x128xbf16>, vector<1x128xf32> -> vector<1x128xf32>
    %212 = arith.addf %209, %211 : vector<1x128xf32>
    %213 = vector.extract_strided_slice %212 {offsets = [0, 0], sizes = [1, 32], strides = [1, 1]} : vector<1x128xf32> to vector<1x32xf32>
    %214 = arith.negf %213 : vector<1x32xf32>
    %215 = math.exp %214 : vector<1x32xf32>
    %cst_128 = arith.constant 1.000000e+00 : f32
    %216 = vector.broadcast %cst_128 : f32 to vector<1x32xf32>
    %217 = arith.addf %216, %215 : vector<1x32xf32>
    %218 = arith.divf %216, %217 : vector<1x32xf32>
    %219 = vector.extract_strided_slice %212 {offsets = [0, 32], sizes = [1, 32], strides = [1, 1]} : vector<1x128xf32> to vector<1x32xf32>
    %220 = arith.negf %219 : vector<1x32xf32>
    %221 = math.exp %220 : vector<1x32xf32>
    %cst_129 = arith.constant 1.000000e+00 : f32
    %222 = vector.broadcast %cst_129 : f32 to vector<1x32xf32>
    %223 = arith.addf %222, %221 : vector<1x32xf32>
    %224 = arith.divf %222, %223 : vector<1x32xf32>
    %225 = vector.extract_strided_slice %212 {offsets = [0, 64], sizes = [1, 32], strides = [1, 1]} : vector<1x128xf32> to vector<1x32xf32>
    %226 = math.tanh %225 : vector<1x32xf32>
    %227 = vector.extract_strided_slice %212 {offsets = [0, 96], sizes = [1, 32], strides = [1, 1]} : vector<1x128xf32> to vector<1x32xf32>
    %228 = arith.negf %227 : vector<1x32xf32>
    %229 = math.exp %228 : vector<1x32xf32>
    %cst_130 = arith.constant 1.000000e+00 : f32
    %230 = vector.broadcast %cst_130 : f32 to vector<1x32xf32>
    %231 = arith.addf %230, %229 : vector<1x32xf32>
    %232 = arith.divf %230, %231 : vector<1x32xf32>
    %233 = arith.mulf %224, %198 : vector<1x32xf32>
    %234 = arith.mulf %218, %226 : vector<1x32xf32>
    %235 = arith.addf %233, %234 : vector<1x32xf32>
    %236 = math.tanh %235 : vector<1x32xf32>
    %237 = arith.mulf %232, %236 : vector<1x32xf32>
    %238 = arith.mulf %237, %130 : vector<1x32xf32>
    %cst_131 = arith.constant dense<0.000000e+00> : vector<1xf32>
    %239 = vector.multi_reduction <add>, %238, %cst_131 [1] : vector<1x32xf32> to vector<1xf32>
    %240 = vector.shape_cast %239 : vector<1xf32> to vector<1x1xf32>
    %241 = vector.broadcast %132 : f32 to vector<1x1xf32>
    %242 = arith.addf %240, %241 : vector<1x1xf32>
    %c0_132 = arith.constant 0 : index
    %c2_133 = arith.constant 2 : index
    %c0_134 = arith.constant 0 : index
    %c0_135 = arith.constant 0 : index
    %243 = vector.load %arg10[%c0_132, %c2_133, %c0_134, %c0_135] : memref<1x8x1x1xf32, #tpu.memory_space<vmem>>, vector<1x1x1x1xf32>
    %244 = vector.shape_cast %243 : vector<1x1x1x1xf32> to vector<1x1xf32>
    %245 = vector.shape_cast %242 : vector<1x1xf32> to vector<1x1x1x1xf32>
    tpu.vector_store %arg10[%c0_132, %c2_133, %c0_134, %c0_135], %245 {strides = array<i32>} : memref<1x8x1x1xf32, #tpu.memory_space<vmem>>, vector<1x1x1x1xf32>,
    %c3_136 = arith.constant 3 : index
    %c0_137 = arith.constant 0 : index
    %246 = vector.load %arg12[%c3_136, %c0_137] : memref<8x128xf32, #tpu.memory_space<vmem>>, vector<1x128xf32>
    %247 = arith.truncf %237 : vector<1x32xf32> to vector<1x32xbf16>
    %cst_138 = arith.constant dense<0.000000e+00> : vector<1x128xf32>
    %248 = tpu.matmul %247, %129, %cst_138 {dimension_numbers = #tpu.dot_dimension_numbers<[1], [0], [0], [1], [0, 0, 1, 1], [], []>} : vector<1x32xbf16>, vector<32x128xbf16>, vector<1x128xf32> -> vector<1x128xf32>
    %249 = arith.addf %246, %248 : vector<1x128xf32>
    %250 = vector.extract_strided_slice %249 {offsets = [0, 0], sizes = [1, 32], strides = [1, 1]} : vector<1x128xf32> to vector<1x32xf32>
    %251 = arith.negf %250 : vector<1x32xf32>
    %252 = math.exp %251 : vector<1x32xf32>
    %cst_139 = arith.constant 1.000000e+00 : f32
    %253 = vector.broadcast %cst_139 : f32 to vector<1x32xf32>
    %254 = arith.addf %253, %252 : vector<1x32xf32>
    %255 = arith.divf %253, %254 : vector<1x32xf32>
    %256 = vector.extract_strided_slice %249 {offsets = [0, 32], sizes = [1, 32], strides = [1, 1]} : vector<1x128xf32> to vector<1x32xf32>
    %257 = arith.negf %256 : vector<1x32xf32>
    %258 = math.exp %257 : vector<1x32xf32>
    %cst_140 = arith.constant 1.000000e+00 : f32
    %259 = vector.broadcast %cst_140 : f32 to vector<1x32xf32>
    %260 = arith.addf %259, %258 : vector<1x32xf32>
    %261 = arith.divf %259, %260 : vector<1x32xf32>
    %262 = vector.extract_strided_slice %249 {offsets = [0, 64], sizes = [1, 32], strides = [1, 1]} : vector<1x128xf32> to vector<1x32xf32>
    %263 = math.tanh %262 : vector<1x32xf32>
    %264 = vector.extract_strided_slice %249 {offsets = [0, 96], sizes = [1, 32], strides = [1, 1]} : vector<1x128xf32> to vector<1x32xf32>
    %265 = arith.negf %264 : vector<1x32xf32>
    %266 = math.exp %265 : vector<1x32xf32>
    %cst_141 = arith.constant 1.000000e+00 : f32
    %267 = vector.broadcast %cst_141 : f32 to vector<1x32xf32>
    %268 = arith.addf %267, %266 : vector<1x32xf32>
    %269 = arith.divf %267, %268 : vector<1x32xf32>
    %270 = arith.mulf %261, %235 : vector<1x32xf32>
    %271 = arith.mulf %255, %263 : vector<1x32xf32>
    %272 = arith.addf %270, %271 : vector<1x32xf32>
    %273 = math.tanh %272 : vector<1x32xf32>
    %274 = arith.mulf %269, %273 : vector<1x32xf32>
    %275 = arith.mulf %274, %130 : vector<1x32xf32>
    %cst_142 = arith.constant dense<0.000000e+00> : vector<1xf32>
    %276 = vector.multi_reduction <add>, %275, %cst_142 [1] : vector<1x32xf32> to vector<1xf32>
    %277 = vector.shape_cast %276 : vector<1xf32> to vector<1x1xf32>
    %278 = vector.broadcast %132 : f32 to vector<1x1xf32>
    %279 = arith.addf %277, %278 : vector<1x1xf32>
    %c0_143 = arith.constant 0 : index
    %c3_144 = arith.constant 3 : index
    %c0_145 = arith.constant 0 : index
    %c0_146 = arith.constant 0 : index
    %280 = vector.load %arg10[%c0_143, %c3_144, %c0_145, %c0_146] : memref<1x8x1x1xf32, #tpu.memory_space<vmem>>, vector<1x1x1x1xf32>
    %281 = vector.shape_cast %280 : vector<1x1x1x1xf32> to vector<1x1xf32>
    %282 = vector.shape_cast %279 : vector<1x1xf32> to vector<1x1x1x1xf32>
    tpu.vector_store %arg10[%c0_143, %c3_144, %c0_145, %c0_146], %282 {strides = array<i32>} : memref<1x8x1x1xf32, #tpu.memory_space<vmem>>, vector<1x1x1x1xf32>,
    %c4_147 = arith.constant 4 : index
    %c0_148 = arith.constant 0 : index
    %283 = vector.load %arg12[%c4_147, %c0_148] : memref<8x128xf32, #tpu.memory_space<vmem>>, vector<1x128xf32>
    %284 = arith.truncf %274 : vector<1x32xf32> to vector<1x32xbf16>
    %cst_149 = arith.constant dense<0.000000e+00> : vector<1x128xf32>
    %285 = tpu.matmul %284, %129, %cst_149 {dimension_numbers = #tpu.dot_dimension_numbers<[1], [0], [0], [1], [0, 0, 1, 1], [], []>} : vector<1x32xbf16>, vector<32x128xbf16>, vector<1x128xf32> -> vector<1x128xf32>
    %286 = arith.addf %283, %285 : vector<1x128xf32>
    %287 = vector.extract_strided_slice %286 {offsets = [0, 0], sizes = [1, 32], strides = [1, 1]} : vector<1x128xf32> to vector<1x32xf32>
    %288 = arith.negf %287 : vector<1x32xf32>
    %289 = math.exp %288 : vector<1x32xf32>
    %cst_150 = arith.constant 1.000000e+00 : f32
    %290 = vector.broadcast %cst_150 : f32 to vector<1x32xf32>
    %291 = arith.addf %290, %289 : vector<1x32xf32>
    %292 = arith.divf %290, %291 : vector<1x32xf32>
    %293 = vector.extract_strided_slice %286 {offsets = [0, 32], sizes = [1, 32], strides = [1, 1]} : vector<1x128xf32> to vector<1x32xf32>
    %294 = arith.negf %293 : vector<1x32xf32>
    %295 = math.exp %294 : vector<1x32xf32>
    %cst_151 = arith.constant 1.000000e+00 : f32
    %296 = vector.broadcast %cst_151 : f32 to vector<1x32xf32>
    %297 = arith.addf %296, %295 : vector<1x32xf32>
    %298 = arith.divf %296, %297 : vector<1x32xf32>
    %299 = vector.extract_strided_slice %286 {offsets = [0, 64], sizes = [1, 32], strides = [1, 1]} : vector<1x128xf32> to vector<1x32xf32>
    %300 = math.tanh %299 : vector<1x32xf32>
    %301 = vector.extract_strided_slice %286 {offsets = [0, 96], sizes = [1, 32], strides = [1, 1]} : vector<1x128xf32> to vector<1x32xf32>
    %302 = arith.negf %301 : vector<1x32xf32>
    %303 = math.exp %302 : vector<1x32xf32>
    %cst_152 = arith.constant 1.000000e+00 : f32
    %304 = vector.broadcast %cst_152 : f32 to vector<1x32xf32>
    %305 = arith.addf %304, %303 : vector<1x32xf32>
    %306 = arith.divf %304, %305 : vector<1x32xf32>
    %307 = arith.mulf %298, %272 : vector<1x32xf32>
    %308 = arith.mulf %292, %300 : vector<1x32xf32>
    %309 = arith.addf %307, %308 : vector<1x32xf32>
    %310 = math.tanh %309 : vector<1x32xf32>
    %311 = arith.mulf %306, %310 : vector<1x32xf32>
    %312 = arith.mulf %311, %130 : vector<1x32xf32>
    %cst_153 = arith.constant dense<0.000000e+00> : vector<1xf32>
    %313 = vector.multi_reduction <add>, %312, %cst_153 [1] : vector<1x32xf32> to vector<1xf32>
    %314 = vector.shape_cast %313 : vector<1xf32> to vector<1x1xf32>
    %315 = vector.broadcast %132 : f32 to vector<1x1xf32>
    %316 = arith.addf %314, %315 : vector<1x1xf32>
    %c0_154 = arith.constant 0 : index
    %c4_155 = arith.constant 4 : index
    %c0_156 = arith.constant 0 : index
    %c0_157 = arith.constant 0 : index
    %317 = vector.load %arg10[%c0_154, %c4_155, %c0_156, %c0_157] : memref<1x8x1x1xf32, #tpu.memory_space<vmem>>, vector<1x1x1x1xf32>
    %318 = vector.shape_cast %317 : vector<1x1x1x1xf32> to vector<1x1xf32>
    %319 = vector.shape_cast %316 : vector<1x1xf32> to vector<1x1x1x1xf32>
    tpu.vector_store %arg10[%c0_154, %c4_155, %c0_156, %c0_157], %319 {strides = array<i32>} : memref<1x8x1x1xf32, #tpu.memory_space<vmem>>, vector<1x1x1x1xf32>,
    %c5_158 = arith.constant 5 : index
    %c0_159 = arith.constant 0 : index
    %320 = vector.load %arg12[%c5_158, %c0_159] : memref<8x128xf32, #tpu.memory_space<vmem>>, vector<1x128xf32>
    %321 = arith.truncf %311 : vector<1x32xf32> to vector<1x32xbf16>
    %cst_160 = arith.constant dense<0.000000e+00> : vector<1x128xf32>
    %322 = tpu.matmul %321, %129, %cst_160 {dimension_numbers = #tpu.dot_dimension_numbers<[1], [0], [0], [1], [0, 0, 1, 1], [], []>} : vector<1x32xbf16>, vector<32x128xbf16>, vector<1x128xf32> -> vector<1x128xf32>
    %323 = arith.addf %320, %322 : vector<1x128xf32>
    %324 = vector.extract_strided_slice %323 {offsets = [0, 0], sizes = [1, 32], strides = [1, 1]} : vector<1x128xf32> to vector<1x32xf32>
    %325 = arith.negf %324 : vector<1x32xf32>
    %326 = math.exp %325 : vector<1x32xf32>
    %cst_161 = arith.constant 1.000000e+00 : f32
    %327 = vector.broadcast %cst_161 : f32 to vector<1x32xf32>
    %328 = arith.addf %327, %326 : vector<1x32xf32>
    %329 = arith.divf %327, %328 : vector<1x32xf32>
    %330 = vector.extract_strided_slice %323 {offsets = [0, 32], sizes = [1, 32], strides = [1, 1]} : vector<1x128xf32> to vector<1x32xf32>
    %331 = arith.negf %330 : vector<1x32xf32>
    %332 = math.exp %331 : vector<1x32xf32>
    %cst_162 = arith.constant 1.000000e+00 : f32
    %333 = vector.broadcast %cst_162 : f32 to vector<1x32xf32>
    %334 = arith.addf %333, %332 : vector<1x32xf32>
    %335 = arith.divf %333, %334 : vector<1x32xf32>
    %336 = vector.extract_strided_slice %323 {offsets = [0, 64], sizes = [1, 32], strides = [1, 1]} : vector<1x128xf32> to vector<1x32xf32>
    %337 = math.tanh %336 : vector<1x32xf32>
    %338 = vector.extract_strided_slice %323 {offsets = [0, 96], sizes = [1, 32], strides = [1, 1]} : vector<1x128xf32> to vector<1x32xf32>
    %339 = arith.negf %338 : vector<1x32xf32>
    %340 = math.exp %339 : vector<1x32xf32>
    %cst_163 = arith.constant 1.000000e+00 : f32
    %341 = vector.broadcast %cst_163 : f32 to vector<1x32xf32>
    %342 = arith.addf %341, %340 : vector<1x32xf32>
    %343 = arith.divf %341, %342 : vector<1x32xf32>
    %344 = arith.mulf %335, %309 : vector<1x32xf32>
    %345 = arith.mulf %329, %337 : vector<1x32xf32>
    %346 = arith.addf %344, %345 : vector<1x32xf32>
    %347 = math.tanh %346 : vector<1x32xf32>
    %348 = arith.mulf %343, %347 : vector<1x32xf32>
    %349 = arith.mulf %348, %130 : vector<1x32xf32>
    %cst_164 = arith.constant dense<0.000000e+00> : vector<1xf32>
    %350 = vector.multi_reduction <add>, %349, %cst_164 [1] : vector<1x32xf32> to vector<1xf32>
    %351 = vector.shape_cast %350 : vector<1xf32> to vector<1x1xf32>
    %352 = vector.broadcast %132 : f32 to vector<1x1xf32>
    %353 = arith.addf %351, %352 : vector<1x1xf32>
    %c0_165 = arith.constant 0 : index
    %c5_166 = arith.constant 5 : index
    %c0_167 = arith.constant 0 : index
    %c0_168 = arith.constant 0 : index
    %354 = vector.load %arg10[%c0_165, %c5_166, %c0_167, %c0_168] : memref<1x8x1x1xf32, #tpu.memory_space<vmem>>, vector<1x1x1x1xf32>
    %355 = vector.shape_cast %354 : vector<1x1x1x1xf32> to vector<1x1xf32>
    %356 = vector.shape_cast %353 : vector<1x1xf32> to vector<1x1x1x1xf32>
    tpu.vector_store %arg10[%c0_165, %c5_166, %c0_167, %c0_168], %356 {strides = array<i32>} : memref<1x8x1x1xf32, #tpu.memory_space<vmem>>, vector<1x1x1x1xf32>,
    %c6_169 = arith.constant 6 : index
    %c0_170 = arith.constant 0 : index
    %357 = vector.load %arg12[%c6_169, %c0_170] : memref<8x128xf32, #tpu.memory_space<vmem>>, vector<1x128xf32>
    %358 = arith.truncf %348 : vector<1x32xf32> to vector<1x32xbf16>
    %cst_171 = arith.constant dense<0.000000e+00> : vector<1x128xf32>
    %359 = tpu.matmul %358, %129, %cst_171 {dimension_numbers = #tpu.dot_dimension_numbers<[1], [0], [0], [1], [0, 0, 1, 1], [], []>} : vector<1x32xbf16>, vector<32x128xbf16>, vector<1x128xf32> -> vector<1x128xf32>
    %360 = arith.addf %357, %359 : vector<1x128xf32>
    %361 = vector.extract_strided_slice %360 {offsets = [0, 0], sizes = [1, 32], strides = [1, 1]} : vector<1x128xf32> to vector<1x32xf32>
    %362 = arith.negf %361 : vector<1x32xf32>
    %363 = math.exp %362 : vector<1x32xf32>
    %cst_172 = arith.constant 1.000000e+00 : f32
    %364 = vector.broadcast %cst_172 : f32 to vector<1x32xf32>
    %365 = arith.addf %364, %363 : vector<1x32xf32>
    %366 = arith.divf %364, %365 : vector<1x32xf32>
    %367 = vector.extract_strided_slice %360 {offsets = [0, 32], sizes = [1, 32], strides = [1, 1]} : vector<1x128xf32> to vector<1x32xf32>
    %368 = arith.negf %367 : vector<1x32xf32>
    %369 = math.exp %368 : vector<1x32xf32>
    %cst_173 = arith.constant 1.000000e+00 : f32
    %370 = vector.broadcast %cst_173 : f32 to vector<1x32xf32>
    %371 = arith.addf %370, %369 : vector<1x32xf32>
    %372 = arith.divf %370, %371 : vector<1x32xf32>
    %373 = vector.extract_strided_slice %360 {offsets = [0, 64], sizes = [1, 32], strides = [1, 1]} : vector<1x128xf32> to vector<1x32xf32>
    %374 = math.tanh %373 : vector<1x32xf32>
    %375 = vector.extract_strided_slice %360 {offsets = [0, 96], sizes = [1, 32], strides = [1, 1]} : vector<1x128xf32> to vector<1x32xf32>
    %376 = arith.negf %375 : vector<1x32xf32>
    %377 = math.exp %376 : vector<1x32xf32>
    %cst_174 = arith.constant 1.000000e+00 : f32
    %378 = vector.broadcast %cst_174 : f32 to vector<1x32xf32>
    %379 = arith.addf %378, %377 : vector<1x32xf32>
    %380 = arith.divf %378, %379 : vector<1x32xf32>
    %381 = arith.mulf %372, %346 : vector<1x32xf32>
    %382 = arith.mulf %366, %374 : vector<1x32xf32>
    %383 = arith.addf %381, %382 : vector<1x32xf32>
    %384 = math.tanh %383 : vector<1x32xf32>
    %385 = arith.mulf %380, %384 : vector<1x32xf32>
    %386 = arith.mulf %385, %130 : vector<1x32xf32>
    %cst_175 = arith.constant dense<0.000000e+00> : vector<1xf32>
    %387 = vector.multi_reduction <add>, %386, %cst_175 [1] : vector<1x32xf32> to vector<1xf32>
    %388 = vector.shape_cast %387 : vector<1xf32> to vector<1x1xf32>
    %389 = vector.broadcast %132 : f32 to vector<1x1xf32>
    %390 = arith.addf %388, %389 : vector<1x1xf32>
    %c0_176 = arith.constant 0 : index
    %c6_177 = arith.constant 6 : index
    %c0_178 = arith.constant 0 : index
    %c0_179 = arith.constant 0 : index
    %391 = vector.load %arg10[%c0_176, %c6_177, %c0_178, %c0_179] : memref<1x8x1x1xf32, #tpu.memory_space<vmem>>, vector<1x1x1x1xf32>
    %392 = vector.shape_cast %391 : vector<1x1x1x1xf32> to vector<1x1xf32>
    %393 = vector.shape_cast %390 : vector<1x1xf32> to vector<1x1x1x1xf32>
    tpu.vector_store %arg10[%c0_176, %c6_177, %c0_178, %c0_179], %393 {strides = array<i32>} : memref<1x8x1x1xf32, #tpu.memory_space<vmem>>, vector<1x1x1x1xf32>,
    %c7_180 = arith.constant 7 : index
    %c0_181 = arith.constant 0 : index
    %394 = vector.load %arg12[%c7_180, %c0_181] : memref<8x128xf32, #tpu.memory_space<vmem>>, vector<1x128xf32>
    %395 = arith.truncf %385 : vector<1x32xf32> to vector<1x32xbf16>
    %cst_182 = arith.constant dense<0.000000e+00> : vector<1x128xf32>
    %396 = tpu.matmul %395, %129, %cst_182 {dimension_numbers = #tpu.dot_dimension_numbers<[1], [0], [0], [1], [0, 0, 1, 1], [], []>} : vector<1x32xbf16>, vector<32x128xbf16>, vector<1x128xf32> -> vector<1x128xf32>
    %397 = arith.addf %394, %396 : vector<1x128xf32>
    %398 = vector.extract_strided_slice %397 {offsets = [0, 0], sizes = [1, 32], strides = [1, 1]} : vector<1x128xf32> to vector<1x32xf32>
    %399 = arith.negf %398 : vector<1x32xf32>
    %400 = math.exp %399 : vector<1x32xf32>
    %cst_183 = arith.constant 1.000000e+00 : f32
    %401 = vector.broadcast %cst_183 : f32 to vector<1x32xf32>
    %402 = arith.addf %401, %400 : vector<1x32xf32>
    %403 = arith.divf %401, %402 : vector<1x32xf32>
    %404 = vector.extract_strided_slice %397 {offsets = [0, 32], sizes = [1, 32], strides = [1, 1]} : vector<1x128xf32> to vector<1x32xf32>
    %405 = arith.negf %404 : vector<1x32xf32>
    %406 = math.exp %405 : vector<1x32xf32>
    %cst_184 = arith.constant 1.000000e+00 : f32
    %407 = vector.broadcast %cst_184 : f32 to vector<1x32xf32>
    %408 = arith.addf %407, %406 : vector<1x32xf32>
    %409 = arith.divf %407, %408 : vector<1x32xf32>
    %410 = vector.extract_strided_slice %397 {offsets = [0, 64], sizes = [1, 32], strides = [1, 1]} : vector<1x128xf32> to vector<1x32xf32>
    %411 = math.tanh %410 : vector<1x32xf32>
    %412 = vector.extract_strided_slice %397 {offsets = [0, 96], sizes = [1, 32], strides = [1, 1]} : vector<1x128xf32> to vector<1x32xf32>
    %413 = arith.negf %412 : vector<1x32xf32>
    %414 = math.exp %413 : vector<1x32xf32>
    %cst_185 = arith.constant 1.000000e+00 : f32
    %415 = vector.broadcast %cst_185 : f32 to vector<1x32xf32>
    %416 = arith.addf %415, %414 : vector<1x32xf32>
    %417 = arith.divf %415, %416 : vector<1x32xf32>
    %418 = arith.mulf %409, %383 : vector<1x32xf32>
    %419 = arith.mulf %403, %411 : vector<1x32xf32>
    %420 = arith.addf %418, %419 : vector<1x32xf32>
    %421 = math.tanh %420 : vector<1x32xf32>
    %422 = arith.mulf %417, %421 : vector<1x32xf32>
    %423 = arith.mulf %422, %130 : vector<1x32xf32>
    %cst_186 = arith.constant dense<0.000000e+00> : vector<1xf32>
    %424 = vector.multi_reduction <add>, %423, %cst_186 [1] : vector<1x32xf32> to vector<1xf32>
    %425 = vector.shape_cast %424 : vector<1xf32> to vector<1x1xf32>
    %426 = vector.broadcast %132 : f32 to vector<1x1xf32>
    %427 = arith.addf %425, %426 : vector<1x1xf32>
    %c0_187 = arith.constant 0 : index
    %c7_188 = arith.constant 7 : index
    %c0_189 = arith.constant 0 : index
    %c0_190 = arith.constant 0 : index
    %428 = vector.load %arg10[%c0_187, %c7_188, %c0_189, %c0_190] : memref<1x8x1x1xf32, #tpu.memory_space<vmem>>, vector<1x1x1x1xf32>
    %429 = vector.shape_cast %428 : vector<1x1x1x1xf32> to vector<1x1xf32>
    %430 = vector.shape_cast %427 : vector<1x1xf32> to vector<1x1x1x1xf32>
    tpu.vector_store %arg10[%c0_187, %c7_188, %c0_189, %c0_190], %430 {strides = array<i32>} : memref<1x8x1x1xf32, #tpu.memory_space<vmem>>, vector<1x1x1x1xf32>,
    %c0_191 = arith.constant 0 : index
    %c0_192 = arith.constant 0 : index
    %c0_193 = arith.constant 0 : index
    %c0_194 = arith.constant 0 : index
    %431 = vector.load %arg10[%c0_191, %c0_192, %c0_193, %c0_194] : memref<1x8x1x1xf32, #tpu.memory_space<vmem>>, vector<1x8x1x1xf32>
    %432 = vector.shape_cast %431 : vector<1x8x1x1xf32> to vector<8x1x1xf32>
    %cst_195 = arith.constant dense<0xFF800000> : vector<1x1xf32>
    %433 = vector.multi_reduction <maximumf>, %432, %cst_195 [0] : vector<8x1x1xf32> to vector<1x1xf32>
    %434 = vector.shape_cast %433 : vector<1x1xf32> to vector<1x1x1xf32>
    %435 = vector.broadcast %434 : vector<1x1x1xf32> to vector<8x1x1xf32>
    %436 = arith.subf %432, %435 : vector<8x1x1xf32>
    %437 = math.exp %436 : vector<8x1x1xf32>
    %cst_196 = arith.constant dense<0.000000e+00> : vector<1x1xf32>
    %438 = vector.multi_reduction <add>, %437, %cst_196 [0] : vector<8x1x1xf32> to vector<1x1xf32>
    %439 = vector.shape_cast %438 : vector<1x1xf32> to vector<1x1x1xf32>
    %440 = vector.broadcast %439 : vector<1x1x1xf32> to vector<8x1x1xf32>
    %441 = arith.divf %437, %440 : vector<8x1x1xf32>
    %c0_197 = arith.constant 0 : index
    %c0_198 = arith.constant 0 : index
    %c0_199 = arith.constant 0 : index
    %c0_200 = arith.constant 0 : index
    %442 = vector.load %arg10[%c0_197, %c0_198, %c0_199, %c0_200] : memref<1x8x1x1xf32, #tpu.memory_space<vmem>>, vector<1x8x1x1xf32>
    %443 = vector.shape_cast %442 : vector<1x8x1x1xf32> to vector<8x1x1xf32>
    %444 = vector.shape_cast %441 : vector<8x1x1xf32> to vector<1x8x1x1xf32>
    tpu.vector_store %arg10[%c0_197, %c0_198, %c0_199, %c0_200], %444 {strides = array<i32>} : memref<1x8x1x1xf32, #tpu.memory_space<vmem>>, vector<1x8x1x1xf32>,
    return
  }
  func.func @transform_1(%arg0: i32, %arg1: memref<2x8xi32, #tpu.memory_space<smem>>) -> (i32, i32) {
    %c0_i32 = arith.constant 0 : i32
    %c0_i32_0 = arith.constant 0 : i32
    %c0_i32_1 = arith.constant 0 : i32
    return %c0_i32, %c0_i32_0 : i32, i32
  }
  func.func @transform_2(%arg0: i32, %arg1: memref<2x8xi32, #tpu.memory_space<smem>>) -> (i32, i32) {
    %c0_i32 = arith.constant 0 : i32
    %c0_i32_0 = arith.constant 0 : i32
    %c0_i32_1 = arith.constant 0 : i32
    return %c0_i32, %c0_i32_0 : i32, i32
  }
  func.func @transform_3(%arg0: i32, %arg1: memref<2x8xi32, #tpu.memory_space<smem>>) -> (i32, i32) {
    %c0_i32 = arith.constant 0 : i32
    %c0_i32_0 = arith.constant 0 : i32
    %c0_i32_1 = arith.constant 0 : i32
    return %c0_i32, %c0_i32_0 : i32, i32
  }
  func.func @transform_4(%arg0: i32, %arg1: memref<2x8xi32, #tpu.memory_space<smem>>) -> (i32, i32) {
    %c0_i32 = arith.constant 0 : i32
    %c0_i32_0 = arith.constant 0 : i32
    %c0_i32_1 = arith.constant 0 : i32
    return %c0_i32, %c0_i32_0 : i32, i32
  }
  func.func @transform_5(%arg0: i32, %arg1: memref<2x8xi32, #tpu.memory_space<smem>>) -> (i32, i32) {
    %c0_i32 = arith.constant 0 : i32
    %c0_i32_0 = arith.constant 0 : i32
    %c0_i32_1 = arith.constant 0 : i32
    return %c0_i32, %c0_i32_0 : i32, i32
  }
  func.func @transform_6(%arg0: i32, %arg1: memref<2x8xi32, #tpu.memory_space<smem>>) -> (i32, i32) {
    %c0_i32 = arith.constant 0 : i32
    %c0_i32_0 = arith.constant 0 : i32
    %c0_i32_1 = arith.constant 0 : i32
    return %c0_i32, %c0_i32_0 : i32, i32
  }
  func.func @transform_7(%arg0: i32, %arg1: memref<2x8xi32, #tpu.memory_space<smem>>) -> (i32, i32) {
    %c0_i32 = arith.constant 0 : i32
    %c0_i32_0 = arith.constant 0 : i32
    %c0_i32_1 = arith.constant 0 : i32
    return %c0_i32, %c0_i32_0 : i32, i32
  }
  func.func @transform_8(%arg0: i32, %arg1: memref<2x8xi32, #tpu.memory_space<smem>>) -> (i32, i32, i32, i32) {
    %c0_i32 = arith.constant 0 : i32
    %c0_i32_0 = arith.constant 0 : i32
    %c0_i32_1 = arith.constant 0 : i32
    %c0_i32_2 = arith.constant 0 : i32
    return %arg0, %c0_i32, %c0_i32_0, %c0_i32_1 : i32, i32, i32, i32
  }
}

</mosaic_0001>

<llo_original>
// kernel: forward.1
$region0: #{forward.1}
  #allocation0 [shape = 'u32[]', space=smem, size = 0x4, offset = 0x4, fixed_abs, tag = 'smem constant byte address 0x4 - core index']
  #allocation1 [shape = 'u32[72,128]{1,0:T(1,128)}', space=vmem, size = 0x9000, scoped, tag = 'internal scratch']
  #allocation2 [shape = 'f32[8,384]{1,0:T(8,128)}', space=vmem, size = 0x3000, scoped, tag = 'scratch operand']
  #allocation3 [shape = 'f32[8,128]{1,0:T(8,128)}', space=vmem, size = 0x1000, scoped, tag = 'scratch operand']
  #allocation4 [shape = 's32[1]{0}', space=sflag, size = 0x4, scoped, tag = 'scratch operand']
  #allocation5 [shape = 's32[1]{0}', space=sflag, size = 0x4, scoped, tag = 'scoped memory for forward.1']
  #allocation6 [shape = 'u8[1024]{0}', space=smem, size = 0x400, scoped, tag = 'prefetched SMEM operand 0']
  #allocation7 [shape = 'f32[1,1]{1,0:T(1,128)S(1)}', space=vmem, size = 0x200, scoped, tag = 'scoped memory for forward.1']
  #allocation13 [shape = 's32[]', space=sflag, size = 0x4, offset = 0, fixed_abs, tag = 'sflag constant byte address 0x0 - dummy sync flag']
  #allocation14 [shape = 's32[]', space=sflag, size = 0x4, offset = 0, fixed_abs, tag = 'sflag constant byte address 0x0 - dummy sync flag']
  #allocation15 [shape = 's32[]', space=sflag, size = 0x4, offset = 0, fixed_abs, tag = 'sflag constant byte address 0x0 - dummy sync flag']
  #allocation16 [shape = 's32[]', space=sflag, size = 0x4, offset = 0, fixed_abs, tag = 'sflag constant byte address 0x0 - dummy sync flag']
  #allocation17 [shape = 's32[]', space=sflag, size = 0x4, offset = 0, fixed_abs, tag = 'sflag constant byte address 0x0 - dummy sync flag']
  #allocation18 [shape = 's32[]', space=sflag, size = 0x4, offset = 0, fixed_abs, tag = 'sflag constant byte address 0x0 - dummy sync flag']
  #allocation19 [shape = 's32[]', space=sflag, size = 0x4, offset = 0, fixed_abs, tag = 'sflag constant byte address 0x0 - dummy sync flag']
  #allocation20 [shape = 's32[]', space=sflag, size = 0x4, offset = 0, fixed_abs, tag = 'sflag constant byte address 0x0 - dummy sync flag']
  %s0 = inlined_call_operand.hbm [shape: s32[2,8], index: 0, kind: input, shape index: {}]
  %s1 = inlined_call_operand.hbm [shape: f32[64,384], index: 1, kind: input, shape index: {}]
  %s2 = inlined_call_operand.hbm [shape: bf16[384,256], index: 2, kind: input, shape index: {}]
  %s3 = inlined_call_operand.vmem [shape: f32[1,256], index: 3, kind: input, shape index: {}]
  %s4 = inlined_call_operand.hbm [shape: bf16[256,128], index: 4, kind: input, shape index: {}]
  %s5 = inlined_call_operand.vmem [shape: f32[1,128], index: 5, kind: input, shape index: {}]
  %s6 = inlined_call_operand.hbm [shape: bf16[32,128], index: 6, kind: input, shape index: {}]
  %s7 = inlined_call_operand.vmem [shape: f32[1,32], index: 7, kind: input, shape index: {}]
  %s8 = inlined_call_operand.<no memory space> [shape: f32[1,1], index: 8, kind: input, shape index: {}]
  %s9 = inlined_call_operand.vmem [shape: f32[2,8,1,1], index: 9, kind: output, shape index: {}]
  %s10 = sld [smem:[#allocation0]]
  $region73: #{forward.1} parent=0
    _
  %s12 = ssub.s32 1, %s10
  %s13 = scalar_select 0, %s12, %s10
  %s15 = sshll.u32 %s0, 4
  %s16 = int_to_ptr.hbm [resolvable:$true] %s15
  %18 = dma.hbm_to_smem %s16, 32, [#allocation6], [#allocation5]
  %v19 = vstv %s8
  %20 = vst [vmem:[#allocation7] sm:$0x1] %v19
  %22 = dma.done [#allocation5], 32
  %23 = sfence
  $region1: #{forward.1} parent=0
    #allocation8 [shape = 'u8[196608]{0}', space=vmem, size = 0x30000, scoped, tag = 'input window, operand 2, single buffered']
    #allocation9 [shape = 's32[2]{0}', space=sflag, size = 0x8, scoped, tag = 'scoped memory for forward.1']
    #allocation10 [shape = 'u8[65536]{0}', space=vmem, size = 0x10000, scoped, tag = 'input window, operand 4, single buffered']
    #allocation11 [shape = 's32[1]{0}', space=sflag, size = 0x4, scoped, tag = 'scoped memory for forward.1']
    #allocation12 [shape = 'u8[8192]{0}', space=vmem, size = 0x2000, scoped, tag = 'input window, operand 6, single buffered']
    %24 = vsyncpa [#allocation9], 0
    %25 = vsyncpa [#allocation11], 0
    loop: start=0, step=1, limit=4
    $region2: #{forward.1} parent=1 // loop_pre_header
      _
    $region3: #{forward.1} parent=1 // loop_header
      %s27 = sphi 0, %s31
      %p28 = scmp.ge.s32.totalorder %s27, 4
      %s35 = sphi 0, %s35
      %s37 = sphi 0, %s35
      %s38 = sphi 0, %s37
      %s52 = sphi 0, %s38
      %s56 = sphi 0, %s56
      %s58 = sphi 0, %s56
      %s59 = sphi 0, %s58
      %s73 = sphi 0, %s59
      %s77 = sphi 0, %s77
      %s79 = sphi 0, %s77
      %s80 = sphi 0, %s79
      %s94 = sphi 0, %s80
      %s98 = sphi 0, %s98
      %s100 = sphi 0, %s98
      %s101 = sphi 0, %s100
      %s115 = sphi 0, %s101
      %s119 = sphi 0, %s119
      %s121 = sphi 0, %s119
      %s122 = sphi 0, %s121
      %s136 = sphi 0, %s122
      %s140 = sphi 0, %s140
      %s142 = sphi 0, %s140
      %s143 = sphi 0, %s142
      %s157 = sphi 0, %s143
      %s161 = sphi 0, %s161
      %s163 = sphi 0, %s161
      %s164 = sphi 0, %s163
      %s178 = sphi 0, %s164
      %s184 = sphi 0, %s186
      %s187 = sphi 0, %s184
      %s188 = sphi 0, %s187
      %s204 = sphi 0, %s188
    $region4: #{forward.1} parent=1 // loop_header_branch
      %30 = sbr.rel (%p28) target = $region8
    $region5: #{forward.1} parent=1 // loop_body
      %s32 = ssub.s32 %s27, 1
      %s33 = ssub.s32 %s27, 2
      %s34 = sadd.s32 %s27, 1
      %s36 = sadd.s32 %s35, 1
      %p39 = scmp.eq.s32.totalorder %s27, 1
      %p40 = scmp.ne.s32.totalorder %s35, %s37
      %p41 = scmp.eq.s32.totalorder %s27, 0
      %p42 = por %p40, %p41
      %p43 = scmp.ne.s32.totalorder %s35, %s37
      %p44 = scmp.eq.s32.totalorder %s32, 1
      %p45 = por %p43, %p44
      %p46 = scmp.ne.s32.totalorder %s37, %s38
      %p47 = scmp.eq.s32.totalorder %s32, 0
      %p48 = por %p46, %p47
      %p49 = scmp.ne.s32.totalorder %s37, %s38
      %p50 = scmp.eq.s32.totalorder %s33, 1
      %p51 = por %p49, %p50
      %p53 = scmp.ne.s32.totalorder %s38, %s52
      %p54 = scmp.eq.s32.totalorder %s33, 0
      %p55 = por %p53, %p54
      %s57 = sadd.s32 %s56, 1
      %p60 = scmp.eq.s32.totalorder %s27, 1
      %p61 = scmp.ne.s32.totalorder %s56, %s58
      %p62 = scmp.eq.s32.totalorder %s27, 0
      %p63 = por %p61, %p62
      %p64 = scmp.ne.s32.totalorder %s56, %s58
      %p65 = scmp.eq.s32.totalorder %s32, 1
      %p66 = por %p64, %p65
      %p67 = scmp.ne.s32.totalorder %s58, %s59
      %p68 = scmp.eq.s32.totalorder %s32, 0
      %p69 = por %p67, %p68
      %p70 = scmp.ne.s32.totalorder %s58, %s59
      %p71 = scmp.eq.s32.totalorder %s33, 1
      %p72 = por %p70, %p71
      %p74 = scmp.ne.s32.totalorder %s59, %s73
      %p75 = scmp.eq.s32.totalorder %s33, 0
      %p76 = por %p74, %p75
      %s78 = sadd.s32 %s77, 1
      %p81 = scmp.eq.s32.totalorder %s27, 1
      %p82 = scmp.ne.s32.totalorder %s77, %s79
      %p83 = scmp.eq.s32.totalorder %s27, 0
      %p84 = por %p82, %p83
      %p85 = scmp.ne.s32.totalorder %s77, %s79
      %p86 = scmp.eq.s32.totalorder %s32, 1
      %p87 = por %p85, %p86
      %p88 = scmp.ne.s32.totalorder %s79, %s80
      %p89 = scmp.eq.s32.totalorder %s32, 0
      %p90 = por %p88, %p89
      %p91 = scmp.ne.s32.totalorder %s79, %s80
      %p92 = scmp.eq.s32.totalorder %s33, 1
      %p93 = por %p91, %p92
      %p95 = scmp.ne.s32.totalorder %s80, %s94
      %p96 = scmp.eq.s32.totalorder %s33, 0
      %p97 = por %p95, %p96
      %s99 = sadd.s32 %s98, 1
      %p102 = scmp.eq.s32.totalorder %s27, 1
      %p103 = scmp.ne.s32.totalorder %s98, %s100
      %p104 = scmp.eq.s32.totalorder %s27, 0
      %p105 = por %p103, %p104
      %p106 = scmp.ne.s32.totalorder %s98, %s100
      %p107 = scmp.eq.s32.totalorder %s32, 1
      %p108 = por %p106, %p107
      %p109 = scmp.ne.s32.totalorder %s100, %s101
      %p110 = scmp.eq.s32.totalorder %s32, 0
      %p111 = por %p109, %p110
      %p112 = scmp.ne.s32.totalorder %s100, %s101
      %p113 = scmp.eq.s32.totalorder %s33, 1
      %p114 = por %p112, %p113
      %p116 = scmp.ne.s32.totalorder %s101, %s115
      %p117 = scmp.eq.s32.totalorder %s33, 0
      %p118 = por %p116, %p117
      %s120 = sadd.s32 %s119, 1
      %p123 = scmp.eq.s32.totalorder %s27, 1
      %p124 = scmp.ne.s32.totalorder %s119, %s121
      %p125 = scmp.eq.s32.totalorder %s27, 0
      %p126 = por %p124, %p125
      %p127 = scmp.ne.s32.totalorder %s119, %s121
      %p128 = scmp.eq.s32.totalorder %s32, 1
      %p129 = por %p127, %p128
      %p130 = scmp.ne.s32.totalorder %s121, %s122
      %p131 = scmp.eq.s32.totalorder %s32, 0
      %p132 = por %p130, %p131
      %p133 = scmp.ne.s32.totalorder %s121, %s122
      %p134 = scmp.eq.s32.totalorder %s33, 1
      %p135 = por %p133, %p134
      %p137 = scmp.ne.s32.totalorder %s122, %s136
      %p138 = scmp.eq.s32.totalorder %s33, 0
      %p139 = por %p137, %p138
      %s141 = sadd.s32 %s140, 1
      %p144 = scmp.eq.s32.totalorder %s27, 1
      %p145 = scmp.ne.s32.totalorder %s140, %s142
      %p146 = scmp.eq.s32.totalorder %s27, 0
      %p147 = por %p145, %p146
      %p148 = scmp.ne.s32.totalorder %s140, %s142
      %p149 = scmp.eq.s32.totalorder %s32, 1
      %p150 = por %p148, %p149
      %p151 = scmp.ne.s32.totalorder %s142, %s143
      %p152 = scmp.eq.s32.totalorder %s32, 0
      %p153 = por %p151, %p152
      %p154 = scmp.ne.s32.totalorder %s142, %s143
      %p155 = scmp.eq.s32.totalorder %s33, 1
      %p156 = por %p154, %p155
      %p158 = scmp.ne.s32.totalorder %s143, %s157
      %p159 = scmp.eq.s32.totalorder %s33, 0
      %p160 = por %p158, %p159
      %s162 = sadd.s32 %s161, 1
      %p165 = scmp.eq.s32.totalorder %s27, 1
      %p166 = scmp.ne.s32.totalorder %s161, %s163
      %p167 = scmp.eq.s32.totalorder %s27, 0
      %p168 = por %p166, %p167
      %p169 = scmp.ne.s32.totalorder %s161, %s163
      %p170 = scmp.eq.s32.totalorder %s32, 1
      %p171 = por %p169, %p170
      %p172 = scmp.ne.s32.totalorder %s163, %s164
      %p173 = scmp.eq.s32.totalorder %s32, 0
      %p174 = por %p172, %p173
      %p175 = scmp.ne.s32.totalorder %s163, %s164
      %p176 = scmp.eq.s32.totalorder %s33, 1
      %p177 = por %p175, %p176
      %p179 = scmp.ne.s32.totalorder %s164, %s178
      %p180 = scmp.eq.s32.totalorder %s33, 0
      %p181 = por %p179, %p180
      %s182 = ssub.s32 %s27, %s34
      %p183 = scmp.eq.s32.totalorder %s182, 0
      %s185 = sadd.s32 %s184, 1
      %s186 = scalar_select %p183, %s184, %s185
      %p189 = pneg %p183
      %p190 = scmp.eq.s32.totalorder %s27, 1
      %p191 = por %p189, %p190
      %p192 = scmp.ne.s32.totalorder %s184, %s187
      %p193 = scmp.eq.s32.totalorder %s27, 0
      %p194 = por %p192, %p193
      %p195 = scmp.ne.s32.totalorder %s184, %s187
      %p196 = scmp.eq.s32.totalorder %s32, 1
      %p197 = por %p195, %p196
      %p198 = scmp.ne.s32.totalorder %s187, %s188
      %p199 = scmp.eq.s32.totalorder %s32, 0
      %p200 = por %p198, %p199
      %p201 = scmp.ne.s32.totalorder %s187, %s188
      %p202 = scmp.eq.s32.totalorder %s33, 1
      %p203 = por %p201, %p202
      %p205 = scmp.ne.s32.totalorder %s188, %s204
      %p206 = scmp.eq.s32.totalorder %s33, 0
      %p207 = por %p205, %p206
      %p208 = scmp.le.s32.totalorder 1, %s27
      %p209 = scmp.lt.s32.totalorder %s27, 3
      %p210 = pnand %p208, %p209
      %p211 = pneg %p210
      // Predicated region
      $region9: #{forward.1} parent=5 // pred_check
        _
      $region10: #{forward.1} parent=5 // pred_check_branch
        %213 = sbr.rel (%p210) target = $region12
      $region11: #{forward.1} parent=5 // pred_region
        %s214 = ssub.s32 %s27, 1
        // Predicated region
        $region13: #{forward.1} parent=11 // pred_check
          %p215 = pneg %p48
        $region14: #{forward.1} parent=11 // pred_check_branch
          %217 = sbr.rel (%p215) target = $region16
        $region15: #{forward.1} parent=11 // pred_region
          %219 = vsyncadd [#allocation9], 0
          %s220 = sshll.u32 %s2, 4
          %s221 = int_to_ptr.hbm [resolvable:$true] %s220
          %s222 = sshll.u32 [#allocation8], 4
          %s223 = int_to_ptr.vmem [resolvable:$true] %s222
          %228 = dma.hbm_to_vmem [thread:$0]  %s221, 6144, %s223, [#allocation9], 128, 128, 8
        $region16: #{forward.1} parent=11 // pred_fallthru
          _
        // Predicated region
        $region17: #{forward.1} parent=11 // pred_check
          %p229 = pneg %p69
        $region18: #{forward.1} parent=11 // pred_check_branch
          %231 = sbr.rel (%p229) target = $region20
        $region19: #{forward.1} parent=11 // pred_region
          _
        $region20: #{forward.1} parent=11 // pred_fallthru
          _
        // Predicated region
        $region21: #{forward.1} parent=11 // pred_check
          %p232 = pneg %p90
        $region22: #{forward.1} parent=11 // pred_check_branch
          %234 = sbr.rel (%p232) target = $region24
        $region23: #{forward.1} parent=11 // pred_region
          %236 = vsyncadd [#allocation11], 0
          %s237 = sshll.u32 %s4, 4
          %s238 = int_to_ptr.hbm [resolvable:$true] %s237
          %s239 = sshll.u32 [#allocation10], 4
          %s240 = int_to_ptr.vmem [resolvable:$true] %s239
          %245 = dma.hbm_to_vmem [thread:$0]  %s238, 2048, %s240, [#allocation11], 64, 64, 4
        $region24: #{forward.1} parent=11 // pred_fallthru
          _
        // Predicated region
        $region25: #{forward.1} parent=11 // pred_check
          %p246 = pneg %p111
        $region26: #{forward.1} parent=11 // pred_check_branch
          %248 = sbr.rel (%p246) target = $region28
        $region27: #{forward.1} parent=11 // pred_region
          _
        $region28: #{forward.1} parent=11 // pred_fallthru
          _
        // Predicated region
        $region29: #{forward.1} parent=11 // pred_check
          %p249 = pneg %p132
        $region30: #{forward.1} parent=11 // pred_check_branch
          %251 = sbr.rel (%p249) target = $region32
        $region31: #{forward.1} parent=11 // pred_region
          %253 = vsyncadd [#allocation11], 0
          %s254 = sshll.u32 %s6, 4
          %s255 = int_to_ptr.hbm [resolvable:$true] %s254
          %s256 = sshll.u32 [#allocation12], 4
          %s257 = int_to_ptr.vmem [resolvable:$true] %s256
          %262 = dma.hbm_to_vmem [thread:$0]  %s255, 256, %s257, [#allocation11], 64, 64, 4
        $region32: #{forward.1} parent=11 // pred_fallthru
          _
        // Predicated region
        $region33: #{forward.1} parent=11 // pred_check
          %p263 = pneg %p153
        $region34: #{forward.1} parent=11 // pred_check_branch
          %265 = sbr.rel (%p263) target = $region36
        $region35: #{forward.1} parent=11 // pred_region
          _
        $region36: #{forward.1} parent=11 // pred_fallthru
          _
        // Predicated region
        $region37: #{forward.1} parent=11 // pred_check
          %p266 = pneg %p174
        $region38: #{forward.1} parent=11 // pred_check_branch
          %268 = sbr.rel (%p266) target = $region40
        $region39: #{forward.1} parent=11 // pred_region
          _
        $region40: #{forward.1} parent=11 // pred_fallthru
          _
      $region12: #{forward.1} parent=5 // pred_fallthru
        _
      %p269 = scmp.lt.s32.totalorder %s27, 2
      // Predicated region
      $region41: #{forward.1} parent=5 // pred_check
        %p270 = pneg %p269
      $region42: #{forward.1} parent=5 // pred_check_branch
        %272 = sbr.rel (%p270) target = $region44
      $region43: #{forward.1} parent=5 // pred_region
        _
      $region44: #{forward.1} parent=5 // pred_fallthru
        _
      %p273 = scmp.le.s32.totalorder 1, %s27
      %p274 = scmp.lt.s32.totalorder %s27, 3
      %p275 = pnand %p273, %p274
      %p276 = pneg %p275
      // Predicated region
      $region45: #{forward.1} parent=5 // pred_check
        _
      $region46: #{forward.1} parent=5 // pred_check_branch
        %278 = sbr.rel (%p275) target = $region48
      $region47: #{forward.1} parent=5 // pred_region
        %s279 = ssub.s32 %s27, 1
        // Predicated region
        $region49: #{forward.1} parent=47 // pred_check
          %p280 = pneg %p48
        $region50: #{forward.1} parent=47 // pred_check_branch
          %282 = sbr.rel (%p280) target = $region52
        $region51: #{forward.1} parent=47 // pred_region
          %284 = dma.done [#allocation9], 6144
        $region52: #{forward.1} parent=47 // pred_fallthru
          _
        // Predicated region
        $region53: #{forward.1} parent=47 // pred_check
          %p285 = pneg %p90
        $region54: #{forward.1} parent=47 // pred_check_branch
          %287 = sbr.rel (%p285) target = $region56
        $region55: #{forward.1} parent=47 // pred_region
          %289 = dma.done [#allocation11], 2048
        $region56: #{forward.1} parent=47 // pred_fallthru
          _
        // Predicated region
        $region57: #{forward.1} parent=47 // pred_check
          %p290 = pneg %p132
        $region58: #{forward.1} parent=47 // pred_check_branch
          %292 = sbr.rel (%p290) target = $region60
        $region59: #{forward.1} parent=47 // pred_region
          %294 = dma.done [#allocation11], 256
        $region60: #{forward.1} parent=47 // pred_fallthru
          _
        %p295 = pneg %p48
        %p296 = pneg %p45
        %p297 = pneg %p69
        %p298 = pneg %p66
        %p299 = pneg %p90
        %p300 = pneg %p87
        %p301 = pneg %p111
        %p302 = pneg %p108
        %p303 = pneg %p132
        %p304 = pneg %p129
        %p305 = pneg %p153
        %p306 = pneg %p150
        %p307 = pneg %p174
        %p308 = pneg %p171
        %p309 = pneg %p200
        %p310 = pneg %p197
        %p311 = scmp.lt.s32.totalorder %s32, 1
        %s312 = scalar_select %p311, %s32, 1
        %s313 = smul.addr %s312, 8
        %s314 = scalar_lea.vmem %s9, %s313
        %p315 = scmp.lt.s32.totalorder %s32, 1
        %s316 = scalar_select %p315, %s32, 1
        %s317 = smul.addr %s316, 8
        %s318 = scalar_lea.vmem %s9, %s317
        %s320 = smul.u32 %s32, 128
        %s321 = sld [smem:[#allocation6 + %s320]]
        %s322 = sshrl.u32 %s321, 3
        %s323 = sand.u32 %s321, 7
        %s324 = smul.u32 %s322, 24
        %s325 = sadd.s32 %s323, %s324
        %s326 = scalar_lea.hbm %s1, %s325
        %s327 = sshll.u32 %s326, 4
        %s328 = int_to_ptr.hbm [resolvable:$true] %s327
        %s329 = sshll.u32 [#allocation2], 4
        %s330 = int_to_ptr.vmem [resolvable:$true] %s329
        %334 = dma.hbm_to_vmem [thread:$0]  %s328, 48, %s330, [#allocation4], 128, 128, 1
        %s335 = sadd.s32 %s320, 1
        %s336 = sld [smem:[#allocation6 + %s335]]
        %s337 = sshrl.u32 %s336, 3
        %s338 = sand.u32 %s336, 7
        %s339 = smul.u32 %s337, 24
        %s340 = sadd.s32 %s338, %s339
        %s341 = scalar_lea.hbm %s1, %s340
        %s342 = scalar_lea.vmem [#allocation2], 1
        %s343 = sshll.u32 %s341, 4
        %s344 = int_to_ptr.hbm [resolvable:$true] %s343
        %s345 = sshll.u32 %s342, 4
        %s346 = int_to_ptr.vmem [resolvable:$true] %s345
        %350 = dma.hbm_to_vmem [thread:$0]  %s344, 48, %s346, [#allocation4], 128, 128, 1
        %s351 = sadd.s32 %s320, 2
        %s352 = sld [smem:[#allocation6 + %s351]]
        %s353 = sshrl.u32 %s352, 3
        %s354 = sand.u32 %s352, 7
        %s355 = smul.u32 %s353, 24
        %s356 = sadd.s32 %s354, %s355
        %s357 = scalar_lea.hbm %s1, %s356
        %s358 = scalar_lea.vmem [#allocation2], 2
        %s359 = sshll.u32 %s357, 4
        %s360 = int_to_ptr.hbm [resolvable:$true] %s359
        %s361 = sshll.u32 %s358, 4
        %s362 = int_to_ptr.vmem [resolvable:$true] %s361
        %366 = dma.hbm_to_vmem [thread:$0]  %s360, 48, %s362, [#allocation4], 128, 128, 1
        %s367 = sadd.s32 %s320, 3
        %s368 = sld [smem:[#allocation6 + %s367]]
        %s369 = sshrl.u32 %s368, 3
        %s370 = sand.u32 %s368, 7
        %s371 = smul.u32 %s369, 24
        %s372 = sadd.s32 %s370, %s371
        %s373 = scalar_lea.hbm %s1, %s372
        %s374 = scalar_lea.vmem [#allocation2], 3
        %s375 = sshll.u32 %s373, 4
        %s376 = int_to_ptr.hbm [resolvable:$true] %s375
        %s377 = sshll.u32 %s374, 4
        %s378 = int_to_ptr.vmem [resolvable:$true] %s377
        %382 = dma.hbm_to_vmem [thread:$0]  %s376, 48, %s378, [#allocation4], 128, 128, 1
        %s383 = sadd.s32 %s320, 4
        %s384 = sld [smem:[#allocation6 + %s383]]
        %s385 = sshrl.u32 %s384, 3
        %s386 = sand.u32 %s384, 7
        %s387 = smul.u32 %s385, 24
        %s388 = sadd.s32 %s386, %s387
        %s389 = scalar_lea.hbm %s1, %s388
        %s390 = scalar_lea.vmem [#allocation2], 4
        %s391 = sshll.u32 %s389, 4
        %s392 = int_to_ptr.hbm [resolvable:$true] %s391
        %s393 = sshll.u32 %s390, 4
        %s394 = int_to_ptr.vmem [resolvable:$true] %s393
        %398 = dma.hbm_to_vmem [thread:$0]  %s392, 48, %s394, [#allocation4], 128, 128, 1
        %s399 = sadd.s32 %s320, 5
        %s400 = sld [smem:[#allocation6 + %s399]]
        %s401 = sshrl.u32 %s400, 3
        %s402 = sand.u32 %s400, 7
        %s403 = smul.u32 %s401, 24
        %s404 = sadd.s32 %s402, %s403
        %s405 = scalar_lea.hbm %s1, %s404
        %s406 = scalar_lea.vmem [#allocation2], 5
        %s407 = sshll.u32 %s405, 4
        %s408 = int_to_ptr.hbm [resolvable:$true] %s407
        %s409 = sshll.u32 %s406, 4
        %s410 = int_to_ptr.vmem [resolvable:$true] %s409
        %414 = dma.hbm_to_vmem [thread:$0]  %s408, 48, %s410, [#allocation4], 128, 128, 1
        %s415 = sadd.s32 %s320, 6
        %s416 = sld [smem:[#allocation6 + %s415]]
        %s417 = sshrl.u32 %s416, 3
        %s418 = sand.u32 %s416, 7
        %s419 = smul.u32 %s417, 24
        %s420 = sadd.s32 %s418, %s419
        %s421 = scalar_lea.hbm %s1, %s420
        %s422 = scalar_lea.vmem [#allocation2], 6
        %s423 = sshll.u32 %s421, 4
        %s424 = int_to_ptr.hbm [resolvable:$true] %s423
        %s425 = sshll.u32 %s422, 4
        %s426 = int_to_ptr.vmem [resolvable:$true] %s425
        %430 = dma.hbm_to_vmem [thread:$0]  %s424, 48, %s426, [#allocation4], 128, 128, 1
        %s431 = sadd.s32 %s320, 7
        %s432 = sld [smem:[#allocation6 + %s431]]
        %s433 = sshrl.u32 %s432, 3
        %s434 = sand.u32 %s432, 7
        %s435 = smul.u32 %s433, 24
        %s436 = sadd.s32 %s434, %s435
        %s437 = scalar_lea.hbm %s1, %s436
        %s438 = scalar_lea.vmem [#allocation2], 7
        %s439 = sshll.u32 %s437, 4
        %s440 = int_to_ptr.hbm [resolvable:$true] %s439
        %s441 = sshll.u32 %s438, 4
        %s442 = int_to_ptr.vmem [resolvable:$true] %s441
        %446 = dma.hbm_to_vmem [thread:$0]  %s440, 48, %s442, [#allocation4], 128, 128, 1
        %s447 = sld [smem:[#allocation6 + %s320]]
        %s448 = smul.u32 1, 3
        %s449 = sshll.u32 %s448, 4
        %450 = dma.done [#allocation4], %s449
        %s451 = sld [smem:[#allocation6 + %s335]]
        %s452 = sshll.u32 %s448, 4
        %453 = dma.done [#allocation4], %s452
        %s454 = sld [smem:[#allocation6 + %s351]]
        %s455 = sshll.u32 %s448, 4
        %456 = dma.done [#allocation4], %s455
        %s457 = sld [smem:[#allocation6 + %s367]]
        %s458 = sshll.u32 %s448, 4
        %459 = dma.done [#allocation4], %s458
        %s460 = sld [smem:[#allocation6 + %s383]]
        %s461 = sshll.u32 %s448, 4
        %462 = dma.done [#allocation4], %s461
        %s463 = sld [smem:[#allocation6 + %s399]]
        %s464 = sshll.u32 %s448, 4
        %465 = dma.done [#allocation4], %s464
        %s466 = sld [smem:[#allocation6 + %s415]]
        %s467 = sshll.u32 %s448, 4
        %468 = dma.done [#allocation4], %s467
        %s469 = sld [smem:[#allocation6 + %s431]]
        %s470 = sshll.u32 %s448, 4
        %471 = dma.done [#allocation4], %s470
        %v472 = vld [vmem:[#allocation2] sm:$0xff]
        %v473 = vld [vmem:[#allocation2 + $0x8] sm:$0xff]
        %v474 = vld [vmem:[#allocation2 + $0x10] sm:$0xff]
        %v475 = vpack.c.bf16 %v472, %v472
        %v476 = vpack.c.bf16 %v473, %v473
        %v477 = vpack.c.bf16 %v474, %v474
        %v478 = vld [vmem:[#allocation8] sm:$0xff]
        %v479 = vld [vmem:[#allocation8 + $0x8] sm:$0xff]
        %v480 = vld [vmem:[#allocation8 + $0x10] sm:$0xff]
        %v481 = vld [vmem:[#allocation8 + $0x18] sm:$0xff]
        %v482 = vld [vmem:[#allocation8 + $0x20] sm:$0xff]
        %v483 = vld [vmem:[#allocation8 + $0x28] sm:$0xff]
        %v484 = vld [vmem:[#allocation8 + $0x30] sm:$0xff]
        %v485 = vld [vmem:[#allocation8 + $0x38] sm:$0xff]
        %v486 = vld [vmem:[#allocation8 + $0x40] sm:$0xff]
        %v487 = vld [vmem:[#allocation8 + $0x48] sm:$0xff]
        %v488 = vld [vmem:[#allocation8 + $0x50] sm:$0xff]
        %v489 = vld [vmem:[#allocation8 + $0x58] sm:$0xff]
        %v490 = vld [vmem:[#allocation8 + $0x60] sm:$0xff]
        %v491 = vld [vmem:[#allocation8 + $0x68] sm:$0xff]
        %v492 = vld [vmem:[#allocation8 + $0x70] sm:$0xff]
        %v493 = vld [vmem:[#allocation8 + $0x78] sm:$0xff]
        %v494 = vld [vmem:[#allocation8 + $0x80] sm:$0xff]
        %v495 = vld [vmem:[#allocation8 + $0x88] sm:$0xff]
        %v496 = vld [vmem:[#allocation8 + $0x90] sm:$0xff]
        %v497 = vld [vmem:[#allocation8 + $0x98] sm:$0xff]
        %v498 = vld [vmem:[#allocation8 + $0xa0] sm:$0xff]
        %v499 = vld [vmem:[#allocation8 + $0xa8] sm:$0xff]
        %v500 = vld [vmem:[#allocation8 + $0xb0] sm:$0xff]
        %v501 = vld [vmem:[#allocation8 + $0xb8] sm:$0xff]
        %v502 = vld [vmem:[#allocation8 + $0xc0] sm:$0xff]
        %v503 = vld [vmem:[#allocation8 + $0xc8] sm:$0xff]
        %v504 = vld [vmem:[#allocation8 + $0xd0] sm:$0xff]
        %v505 = vld [vmem:[#allocation8 + $0xd8] sm:$0xff]
        %v506 = vld [vmem:[#allocation8 + $0xe0] sm:$0xff]
        %v507 = vld [vmem:[#allocation8 + $0xe8] sm:$0xff]
        %v508 = vld [vmem:[#allocation8 + $0xf0] sm:$0xff]
        %v509 = vld [vmem:[#allocation8 + $0xf8] sm:$0xff]
        %v510 = vld [vmem:[#allocation8 + $0x100] sm:$0xff]
        %v511 = vld [vmem:[#allocation8 + $0x108] sm:$0xff]
        %v512 = vld [vmem:[#allocation8 + $0x110] sm:$0xff]
        %v513 = vld [vmem:[#allocation8 + $0x118] sm:$0xff]
        %v514 = vld [vmem:[#allocation8 + $0x120] sm:$0xff]
        %v515 = vld [vmem:[#allocation8 + $0x128] sm:$0xff]
        %v516 = vld [vmem:[#allocation8 + $0x130] sm:$0xff]
        %v517 = vld [vmem:[#allocation8 + $0x138] sm:$0xff]
        %v518 = vld [vmem:[#allocation8 + $0x140] sm:$0xff]
        %v519 = vld [vmem:[#allocation8 + $0x148] sm:$0xff]
        %v520 = vld [vmem:[#allocation8 + $0x150] sm:$0xff]
        %v521 = vld [vmem:[#allocation8 + $0x158] sm:$0xff]
        %v522 = vld [vmem:[#allocation8 + $0x160] sm:$0xff]
        %v523 = vld [vmem:[#allocation8 + $0x168] sm:$0xff]
        %v524 = vld [vmem:[#allocation8 + $0x170] sm:$0xff]
        %v525 = vld [vmem:[#allocation8 + $0x178] sm:$0xff]
        %v526 = vld [vmem:[%s3] sm:$0x3]
        %v528 = vperm.slane %v526, 0
        %v529 = vperm.slane %v526, 1
        %v580 = vunpack.c.l.b16 %v478
        %v581 = vunpack.c.h.b16 %v478
        %v582 = vunpack.c.l.b16 %v479
        %v583 = vunpack.c.h.b16 %v479
        %v584 = vunpack.c.l.b16 %v480
        %v585 = vunpack.c.h.b16 %v480
        %v586 = vunpack.c.l.b16 %v481
        %v587 = vunpack.c.h.b16 %v481
        %v588 = vunpack.c.l.b16 %v482
        %v589 = vunpack.c.h.b16 %v482
        %v590 = vunpack.c.l.b16 %v483
        %v591 = vunpack.c.h.b16 %v483
        %v592 = vunpack.c.l.b16 %v484
        %v593 = vunpack.c.h.b16 %v484
        %v594 = vunpack.c.l.b16 %v485
        %v595 = vunpack.c.h.b16 %v485
        %v596 = vunpack.c.l.b16 %v486
        %v597 = vunpack.c.h.b16 %v486
        %v598 = vunpack.c.l.b16 %v487
        %v599 = vunpack.c.h.b16 %v487
        %v600 = vunpack.c.l.b16 %v488
        %v601 = vunpack.c.h.b16 %v488
        %v602 = vunpack.c.l.b16 %v489
        %v603 = vunpack.c.h.b16 %v489
        %v604 = vunpack.c.l.b16 %v490
        %v605 = vunpack.c.h.b16 %v490
        %v606 = vunpack.c.l.b16 %v491
        %v607 = vunpack.c.h.b16 %v491
        %v608 = vunpack.c.l.b16 %v492
        %v609 = vunpack.c.h.b16 %v492
        %v610 = vunpack.c.l.b16 %v493
        %v611 = vunpack.c.h.b16 %v493
        %v612 = vunpack.c.l.b16 %v494
        %v613 = vunpack.c.h.b16 %v494
        %v614 = vunpack.c.l.b16 %v495
        %v615 = vunpack.c.h.b16 %v495
        %v616 = vunpack.c.l.b16 %v496
        %v617 = vunpack.c.h.b16 %v496
        %v618 = vunpack.c.l.b16 %v497
        %v619 = vunpack.c.h.b16 %v497
        %v620 = vunpack.c.l.b16 %v498
        %v621 = vunpack.c.h.b16 %v498
        %v622 = vunpack.c.l.b16 %v499
        %v623 = vunpack.c.h.b16 %v499
        %v624 = vunpack.c.l.b16 %v500
        %v625 = vunpack.c.h.b16 %v500
        %v626 = vunpack.c.l.b16 %v501
        %v627 = vunpack.c.h.b16 %v501
        %v628 = vunpack.c.l.b16 %v502
        %v629 = vunpack.c.h.b16 %v502
        %v630 = vunpack.c.l.b16 %v503
        %v631 = vunpack.c.h.b16 %v503
        %v632 = vunpack.c.l.b16 %v504
        %v633 = vunpack.c.h.b16 %v504
        %v634 = vunpack.c.l.b16 %v505
        %v635 = vunpack.c.h.b16 %v505
        %v636 = vunpack.c.l.b16 %v506
        %v637 = vunpack.c.h.b16 %v506
        %v638 = vunpack.c.l.b16 %v507
        %v639 = vunpack.c.h.b16 %v507
        %v640 = vunpack.c.l.b16 %v508
        %v641 = vunpack.c.h.b16 %v508
        %v642 = vunpack.c.l.b16 %v509
        %v643 = vunpack.c.h.b16 %v509
        %v644 = vunpack.c.l.b16 %v510
        %v645 = vunpack.c.h.b16 %v510
        %v646 = vunpack.c.l.b16 %v511
        %v647 = vunpack.c.h.b16 %v511
        %v648 = vunpack.c.l.b16 %v512
        %v649 = vunpack.c.h.b16 %v512
        %v650 = vunpack.c.l.b16 %v513
        %v651 = vunpack.c.h.b16 %v513
        %v652 = vunpack.c.l.b16 %v514
        %v653 = vunpack.c.h.b16 %v514
        %v654 = vunpack.c.l.b16 %v515
        %v655 = vunpack.c.h.b16 %v515
        %v656 = vunpack.c.l.b16 %v516
        %v657 = vunpack.c.h.b16 %v516
        %v658 = vunpack.c.l.b16 %v517
        %v659 = vunpack.c.h.b16 %v517
        %v660 = vunpack.c.l.b16 %v518
        %v661 = vunpack.c.h.b16 %v518
        %v662 = vunpack.c.l.b16 %v519
        %v663 = vunpack.c.h.b16 %v519
        %v664 = vunpack.c.l.b16 %v520
        %v665 = vunpack.c.h.b16 %v520
        %v666 = vunpack.c.l.b16 %v521
        %v667 = vunpack.c.h.b16 %v521
        %v668 = vunpack.c.l.b16 %v522
        %v669 = vunpack.c.h.b16 %v522
        %v670 = vunpack.c.l.b16 %v523
        %v671 = vunpack.c.h.b16 %v523
        %v672 = vunpack.c.l.b16 %v524
        %v673 = vunpack.c.h.b16 %v524
        %v674 = vunpack.c.l.b16 %v525
        %v675 = vunpack.c.h.b16 %v525
        %v676 = vpack.c.b16 %v582, %v580
        %v677 = vpack.c.b16 %v583, %v581
        %v678 = vpack.c.b16 %v586, %v584
        %v679 = vpack.c.b16 %v587, %v585
        %v680 = vpack.c.b16 %v590, %v588
        %v681 = vpack.c.b16 %v591, %v589
        %v682 = vpack.c.b16 %v594, %v592
        %v683 = vpack.c.b16 %v595, %v593
        %v684 = vpack.c.b16 %v598, %v596
        %v685 = vpack.c.b16 %v599, %v597
        %v686 = vpack.c.b16 %v602, %v600
        %v687 = vpack.c.b16 %v603, %v601
        %v688 = vpack.c.b16 %v606, %v604
        %v689 = vpack.c.b16 %v607, %v605
        %v690 = vpack.c.b16 %v610, %v608
        %v691 = vpack.c.b16 %v611, %v609
        %v692 = vpack.c.b16 %v614, %v612
        %v693 = vpack.c.b16 %v615, %v613
        %v694 = vpack.c.b16 %v618, %v616
        %v695 = vpack.c.b16 %v619, %v617
        %v696 = vpack.c.b16 %v622, %v620
        %v697 = vpack.c.b16 %v623, %v621
        %v698 = vpack.c.b16 %v626, %v624
        %v699 = vpack.c.b16 %v627, %v625
        %v700 = vpack.c.b16 %v630, %v628
        %v701 = vpack.c.b16 %v631, %v629
        %v702 = vpack.c.b16 %v634, %v632
        %v703 = vpack.c.b16 %v635, %v633
        %v704 = vpack.c.b16 %v638, %v636
        %v705 = vpack.c.b16 %v639, %v637
        %v706 = vpack.c.b16 %v642, %v640
        %v707 = vpack.c.b16 %v643, %v641
        %v708 = vpack.c.b16 %v646, %v644
        %v709 = vpack.c.b16 %v647, %v645
        %v710 = vpack.c.b16 %v650, %v648
        %v711 = vpack.c.b16 %v651, %v649
        %v712 = vpack.c.b16 %v654, %v652
        %v713 = vpack.c.b16 %v655, %v653
        %v714 = vpack.c.b16 %v658, %v656
        %v715 = vpack.c.b16 %v659, %v657
        %v716 = vpack.c.b16 %v662, %v660
        %v717 = vpack.c.b16 %v663, %v661
        %v718 = vpack.c.b16 %v666, %v664
        %v719 = vpack.c.b16 %v667, %v665
        %v720 = vpack.c.b16 %v670, %v668
        %v721 = vpack.c.b16 %v671, %v669
        %v722 = vpack.c.b16 %v674, %v672
        %v723 = vpack.c.b16 %v675, %v673
        %772 = vmatpush.bf16.msra.mxu0 %v690
        %773 = vmatpush.bf16.msra.mxu0 %v688
        %774 = vmatpush.bf16.msra.mxu0 %v686
        %775 = vmatpush.bf16.msra.mxu0 %v684
        %776 = vmatpush.bf16.msra.mxu0 %v682
        %777 = vmatpush.bf16.msra.mxu0 %v680
        %778 = vmatpush.bf16.msra.mxu0 %v678
        %779 = vmatpush.bf16.msra.mxu0 %v676
        %780 = vmatmul.bf16.gmra.mxu0 %v475
        %v781 = vpop.f32.mrf.mxu0
        %v782 = vadd.f32 %v528, %v781
        %v783 = vpop.f32.mrf.mxu0
        %784 = vdwg.mxu0
        %785 = vmatpush.bf16.msra.mxu0 %v706
        %786 = vmatpush.bf16.msra.mxu0 %v704
        %787 = vmatpush.bf16.msra.mxu0 %v702
        %788 = vmatpush.bf16.msra.mxu0 %v700
        %789 = vmatpush.bf16.msra.mxu0 %v698
        %790 = vmatpush.bf16.msra.mxu0 %v696
        %791 = vmatpush.bf16.msra.mxu0 %v694
        %792 = vmatpush.bf16.msra.mxu0 %v692
        %793 = vmatmul.bf16.gmra.mxu0 %v476
        %v794 = vpop.f32.mrf.mxu0
        %v795 = vadd.f32 %v782, %v794
        %v796 = vpop.f32.mrf.mxu0
        %797 = vdwg.mxu0
        %798 = vmatpush.bf16.msra.mxu0 %v722
        %799 = vmatpush.bf16.msra.mxu0 %v720
        %800 = vmatpush.bf16.msra.mxu0 %v718
        %801 = vmatpush.bf16.msra.mxu0 %v716
        %802 = vmatpush.bf16.msra.mxu0 %v714
        %803 = vmatpush.bf16.msra.mxu0 %v712
        %804 = vmatpush.bf16.msra.mxu0 %v710
        %805 = vmatpush.bf16.msra.mxu0 %v708
        %806 = vmatmul.bf16.gmra.mxu0 %v477
        %v807 = vpop.f32.mrf.mxu0
        %v808 = vadd.f32 %v795, %v807
        %v809 = vpop.f32.mrf.mxu0
        %810 = vdwg.mxu0
        %811 = vmatpush.bf16.msra.mxu0 %v691
        %812 = vmatpush.bf16.msra.mxu0 %v689
        %813 = vmatpush.bf16.msra.mxu0 %v687
        %814 = vmatpush.bf16.msra.mxu0 %v685
        %815 = vmatpush.bf16.msra.mxu0 %v683
        %816 = vmatpush.bf16.msra.mxu0 %v681
        %817 = vmatpush.bf16.msra.mxu0 %v679
        %818 = vmatpush.bf16.msra.mxu0 %v677
        %819 = vmatmul.bf16.gmra.mxu0 %v475
        %v820 = vpop.f32.mrf.mxu0
        %v821 = vadd.f32 %v529, %v820
        %v822 = vpop.f32.mrf.mxu0
        %823 = vdwg.mxu0
        %824 = vmatpush.bf16.msra.mxu0 %v707
        %825 = vmatpush.bf16.msra.mxu0 %v705
        %826 = vmatpush.bf16.msra.mxu0 %v703
        %827 = vmatpush.bf16.msra.mxu0 %v701
        %828 = vmatpush.bf16.msra.mxu0 %v699
        %829 = vmatpush.bf16.msra.mxu0 %v697
        %830 = vmatpush.bf16.msra.mxu0 %v695
        %831 = vmatpush.bf16.msra.mxu0 %v693
        %832 = vmatmul.bf16.gmra.mxu0 %v476
        %v833 = vpop.f32.mrf.mxu0
        %v834 = vadd.f32 %v821, %v833
        %v835 = vpop.f32.mrf.mxu0
        %836 = vdwg.mxu0
        %837 = vmatpush.bf16.msra.mxu0 %v723
        %838 = vmatpush.bf16.msra.mxu0 %v721
        %839 = vmatpush.bf16.msra.mxu0 %v719
        %840 = vmatpush.bf16.msra.mxu0 %v717
        %841 = vmatpush.bf16.msra.mxu0 %v715
        %842 = vmatpush.bf16.msra.mxu0 %v713
        %843 = vmatpush.bf16.msra.mxu0 %v711
        %844 = vmatpush.bf16.msra.mxu0 %v709
        %845 = vmatmul.bf16.gmra.mxu0 %v477
        %v846 = vpop.f32.mrf.mxu0
        %v847 = vadd.f32 %v834, %v846
        %v848 = vpop.f32.mrf.mxu0
        %849 = vdwg.mxu0
        %v850 = vmax.f32 %v808, 0.0
        %v851 = vmax.f32 %v847, 0.0
        %v852 = vpack.c.bf16 %v850, %v850
        %v853 = vpack.c.bf16 %v851, %v851
        %v854 = vld [vmem:[#allocation10] sm:$0xf]
        %v855 = vld [vmem:[#allocation10 + $0x4] sm:$0xf]
        %v856 = vld [vmem:[#allocation10 + $0x8] sm:$0xf]
        %v857 = vld [vmem:[#allocation10 + $0xc] sm:$0xf]
        %v858 = vld [vmem:[#allocation10 + $0x10] sm:$0xf]
        %v859 = vld [vmem:[#allocation10 + $0x14] sm:$0xf]
        %v860 = vld [vmem:[#allocation10 + $0x18] sm:$0xf]
        %v861 = vld [vmem:[#allocation10 + $0x1c] sm:$0xf]
        %v862 = vld [vmem:[#allocation10 + $0x20] sm:$0xf]
        %v863 = vld [vmem:[#allocation10 + $0x24] sm:$0xf]
        %v864 = vld [vmem:[#allocation10 + $0x28] sm:$0xf]
        %v865 = vld [vmem:[#allocation10 + $0x2c] sm:$0xf]
        %v866 = vld [vmem:[#allocation10 + $0x30] sm:$0xf]
        %v867 = vld [vmem:[#allocation10 + $0x34] sm:$0xf]
        %v868 = vld [vmem:[#allocation10 + $0x38] sm:$0xf]
        %v869 = vld [vmem:[#allocation10 + $0x3c] sm:$0xf]
        %v870 = vld [vmem:[#allocation10 + $0x40] sm:$0xf]
        %v871 = vld [vmem:[#allocation10 + $0x44] sm:$0xf]
        %v872 = vld [vmem:[#allocation10 + $0x48] sm:$0xf]
        %v873 = vld [vmem:[#allocation10 + $0x4c] sm:$0xf]
        %v874 = vld [vmem:[#allocation10 + $0x50] sm:$0xf]
        %v875 = vld [vmem:[#allocation10 + $0x54] sm:$0xf]
        %v876 = vld [vmem:[#allocation10 + $0x58] sm:$0xf]
        %v877 = vld [vmem:[#allocation10 + $0x5c] sm:$0xf]
        %v878 = vld [vmem:[#allocation10 + $0x60] sm:$0xf]
        %v879 = vld [vmem:[#allocation10 + $0x64] sm:$0xf]
        %v880 = vld [vmem:[#allocation10 + $0x68] sm:$0xf]
        %v881 = vld [vmem:[#allocation10 + $0x6c] sm:$0xf]
        %v882 = vld [vmem:[#allocation10 + $0x70] sm:$0xf]
        %v883 = vld [vmem:[#allocation10 + $0x74] sm:$0xf]
        %v884 = vld [vmem:[#allocation10 + $0x78] sm:$0xf]
        %v885 = vld [vmem:[#allocation10 + $0x7c] sm:$0xf]
        %v886 = vld [vmem:[%s5] sm:$0x1]
        %v888 = vperm.slane %v886, 0
        %v922 = vunpack.c.l.b16 %v854
        %v923 = vunpack.c.l.b16 %v855
        %v924 = vunpack.c.l.b16 %v856
        %v925 = vunpack.c.l.b16 %v857
        %v926 = vunpack.c.l.b16 %v858
        %v927 = vunpack.c.l.b16 %v859
        %v928 = vunpack.c.l.b16 %v860
        %v929 = vunpack.c.l.b16 %v861
        %v930 = vunpack.c.l.b16 %v862
        %v931 = vunpack.c.l.b16 %v863
        %v932 = vunpack.c.l.b16 %v864
        %v933 = vunpack.c.l.b16 %v865
        %v934 = vunpack.c.l.b16 %v866
        %v935 = vunpack.c.l.b16 %v867
        %v936 = vunpack.c.l.b16 %v868
        %v937 = vunpack.c.l.b16 %v869
        %v938 = vunpack.c.l.b16 %v870
        %v939 = vunpack.c.l.b16 %v871
        %v940 = vunpack.c.l.b16 %v872
        %v941 = vunpack.c.l.b16 %v873
        %v942 = vunpack.c.l.b16 %v874
        %v943 = vunpack.c.l.b16 %v875
        %v944 = vunpack.c.l.b16 %v876
        %v945 = vunpack.c.l.b16 %v877
        %v946 = vunpack.c.l.b16 %v878
        %v947 = vunpack.c.l.b16 %v879
        %v948 = vunpack.c.l.b16 %v880
        %v949 = vunpack.c.l.b16 %v881
        %v950 = vunpack.c.l.b16 %v882
        %v951 = vunpack.c.l.b16 %v883
        %v952 = vunpack.c.l.b16 %v884
        %v953 = vunpack.c.l.b16 %v885
        %v954 = vpack.c.b16 %v923, %v922
        %v955 = vpack.c.b16 %v925, %v924
        %v956 = vpack.c.b16 %v927, %v926
        %v957 = vpack.c.b16 %v929, %v928
        %v958 = vpack.c.b16 %v931, %v930
        %v959 = vpack.c.b16 %v933, %v932
        %v960 = vpack.c.b16 %v935, %v934
        %v961 = vpack.c.b16 %v937, %v936
        %v962 = vpack.c.b16 %v939, %v938
        %v963 = vpack.c.b16 %v941, %v940
        %v964 = vpack.c.b16 %v943, %v942
        %v965 = vpack.c.b16 %v945, %v944
        %v966 = vpack.c.b16 %v947, %v946
        %v967 = vpack.c.b16 %v949, %v948
        %v968 = vpack.c.b16 %v951, %v950
        %v969 = vpack.c.b16 %v953, %v952
        %986 = vmatpush.bf16.msra.mxu0 %v961
        %987 = vmatpush.bf16.msra.mxu0 %v960
        %988 = vmatpush.bf16.msra.mxu0 %v959
        %989 = vmatpush.bf16.msra.mxu0 %v958
        %990 = vmatpush.bf16.msra.mxu0 %v957
        %991 = vmatpush.bf16.msra.mxu0 %v956
        %992 = vmatpush.bf16.msra.mxu0 %v955
        %993 = vmatpush.bf16.msra.mxu0 %v954
        %994 = vmatmul.bf16.gmra.mxu0 %v852
        %v995 = vpop.f32.mrf.mxu0
        %v996 = vadd.f32 %v888, %v995
        %v997 = vpop.f32.mrf.mxu0
        %998 = vdwg.mxu0
        %999 = vmatpush.bf16.msra.mxu0 %v969
        %1000 = vmatpush.bf16.msra.mxu0 %v968
        %1001 = vmatpush.bf16.msra.mxu0 %v967
        %1002 = vmatpush.bf16.msra.mxu0 %v966
        %1003 = vmatpush.bf16.msra.mxu0 %v965
        %1004 = vmatpush.bf16.msra.mxu0 %v964
        %1005 = vmatpush.bf16.msra.mxu0 %v963
        %1006 = vmatpush.bf16.msra.mxu0 %v962
        %1007 = vmatmul.bf16.gmra.mxu0 %v853
        %v1008 = vpop.f32.mrf.mxu0
        %v1009 = vadd.f32 %v996, %v1008
        %v1010 = vpop.f32.mrf.mxu0
        %1011 = vdwg.mxu0
        %1012 = vst [vmem:[#allocation3] sm:$0xff] %v1009
        %v1013 = vld [vmem:[#allocation12] sm:$0xf]
        %v1014 = vld [vmem:[#allocation12 + $0x4] sm:$0xf]
        %v1015 = vld [vmem:[#allocation12 + $0x8] sm:$0xf]
        %v1016 = vld [vmem:[#allocation12 + $0xc] sm:$0xf]
        %v1017 = vld [vmem:[%s7] sm:$0x1]
        %v1018 = vld [vmem:[#allocation7] sm:$0x1]
        %s1019 = vtos %v1018
        %v1020 = vld [vmem:[#allocation3] sm:$0x1]
        %v1025 = vunpack.c.l.b16 %v1013
        %v1026 = vunpack.c.l.b16 %v1014
        %v1027 = vunpack.c.l.b16 %v1015
        %v1028 = vunpack.c.l.b16 %v1016
        %v1029 = vpack.c.b16 %v1026, %v1025
        %v1030 = vpack.c.b16 %v1028, %v1027
        %vm1033 = vcmask 261120
        %v1035 = vsel %vm1033, 0, 0
        %1037 = vmatpush.bf16.msra.mxu0 0
        %1038 = vmatpush.bf16.msra.mxu0 0
        %1039 = vmatpush.bf16.msra.mxu0 0
        %1040 = vmatpush.bf16.msra.mxu0 0
        %1041 = vmatpush.bf16.msra.mxu0 0
        %1042 = vmatpush.bf16.msra.mxu0 0
        %1043 = vmatpush.bf16.msra.mxu0 %v1030
        %1044 = vmatpush.bf16.msra.mxu0 %v1029
        %1045 = vmatmul.bf16.gmra.mxu0 %v1035
        %v1046 = vpop.f32.mrf.mxu0
        %v1047 = vadd.f32 0.0, %v1046
        %v1048 = vpop.f32.mrf.mxu0
        %1049 = vdwg.mxu0
        %v1050 = vadd.f32 %v1020, %v1047
        %v1051 = vxor.u32 %v1050, 2147483648
        %v1052 = vmul.f32 %v1051, 1.442695
        %v1053 = vpow.pop %v1052
        %v1054 = vadd.f32 %v1053, 1.0
        %v1055 = vrcp.pop %v1054
        %v1056 = vmul.f32 %v1054, %v1055
        %v1057 = vsub.f32 1.0, %v1056
        %v1058 = vmul.f32 %v1055, %v1057
        %v1059 = vadd.f32 %v1055, %v1058
        %vm1060 = vweird.f32 %v1054
        %vm1061 = vweird.f32 %v1055
        %vm1062 = vmor %vm1060, %vm1061
        %v1063 = vsel %vm1062, %v1055, %v1059
        %v1064 = vand.u32 2147483647, %v1054
        %vm1065 = vcmp.eq.f32.partialorder %v1064, 8.507059e+37
        %v1066 = vand.u32 %v1054, 2147483648
        %v1067 = vor.u32 1.1754944e-38, %v1066
        %v1068 = vsel %vm1065, %v1067, %v1063
        %v1069 = vmul.f32 1.0, %v1068
        %v1070 = vtanh.pop %v1050
        %v1071 = vmul.f32 %v1069, 0.0
        %1073 = vrot.lane.b32.xlu0 %v1070, 64
        %v1074 = vpop.permute.xlu0 %1073
        %v1076 = vmul.f32 %v1069, %v1074
        %1078 = vrot.lane.b32.xlu0 %v1076, 32
        %v1079 = vpop.permute.xlu0 %1078
        %v1081 = vadd.f32 %v1071, %v1079
        %v1082 = vtanh.pop %v1081
        %1084 = vrot.lane.b32.xlu0 %v1082, 64
        %v1085 = vpop.permute.xlu0 %1084
        %v1087 = vmul.f32 %v1069, %v1085
        %v1089 = vperm.slane %v1017, 0
        %1090 = vrot.lane.b32.xlu0 %v1089, 96
        %v1091 = vpop.permute.xlu0 %1090
        %v1093 = vmul.f32 %v1087, %v1091
        %1095 = vrot.lane.b32.xlu0 %v1093, 32
        %v1096 = vpop.permute.xlu0 %1095
        %vm1098 = vcmask 253952
        %v1099 = vsel %vm1098, %v1096, 0.0
        %1100 = vadd.xlane.f32.xlu0 %v1099
        %v1101 = vpop.xlane.xlu0 %1100
        %v1102 = vstv %s1019
        %v1103 = vadd.f32 %v1101, %v1102
        %vm1104 = vcmask 0
        %1105 = vst.msk [vmem:[%s318] sm:$0x1] %vm1104, %v1103
        %v1106 = vld [vmem:[#allocation3 + $0x1] sm:$0x1]
        %v1107 = vpack.c.bf16 %v1087, %v1087
        %1109 = vrot.lane.b32.xlu0 %v1107, 32
        %v1110 = vpop.permute.xlu0 %1109
        %v1112 = vsel %vm1033, %v1110, 0
        %1114 = vmatpush.bf16.msra.mxu0 0
        %1115 = vmatpush.bf16.msra.mxu0 0
        %1116 = vmatpush.bf16.msra.mxu0 0
        %1117 = vmatpush.bf16.msra.mxu0 0
        %1118 = vmatpush.bf16.msra.mxu0 0
        %1119 = vmatpush.bf16.msra.mxu0 0
        %1120 = vmatpush.bf16.msra.mxu0 %v1030
        %1121 = vmatpush.bf16.msra.mxu0 %v1029
        %1122 = vmatmul.bf16.gmra.mxu0 %v1112
        %v1123 = vpop.f32.mrf.mxu0
        %v1124 = vadd.f32 0.0, %v1123
        %v1125 = vpop.f32.mrf.mxu0
        %1126 = vdwg.mxu0
        %v1127 = vadd.f32 %v1106, %v1124
        %v1128 = vxor.u32 %v1127, 2147483648
        %v1129 = vmul.f32 %v1128, 1.442695
        %v1130 = vpow.pop %v1129
        %v1131 = vadd.f32 %v1130, 1.0
        %v1132 = vrcp.pop %v1131
        %v1133 = vmul.f32 %v1131, %v1132
        %v1134 = vsub.f32 1.0, %v1133
        %v1135 = vmul.f32 %v1132, %v1134
        %v1136 = vadd.f32 %v1132, %v1135
        %vm1137 = vweird.f32 %v1131
        %vm1138 = vweird.f32 %v1132
        %vm1139 = vmor %vm1137, %vm1138
        %v1140 = vsel %vm1139, %v1132, %v1136
        %v1141 = vand.u32 2147483647, %v1131
        %vm1142 = vcmp.eq.f32.partialorder %v1141, 8.507059e+37
        %v1143 = vand.u32 %v1131, 2147483648
        %v1144 = vor.u32 1.1754944e-38, %v1143
        %v1145 = vsel %vm1142, %v1144, %v1140
        %v1146 = vmul.f32 1.0, %v1145
        %v1147 = vtanh.pop %v1127
        %v1148 = vmul.f32 %v1146, %v1081
        %1150 = vrot.lane.b32.xlu0 %v1147, 64
        %v1151 = vpop.permute.xlu0 %1150
        %v1153 = vmul.f32 %v1146, %v1151
        %1155 = vrot.lane.b32.xlu0 %v1153, 32
        %v1156 = vpop.permute.xlu0 %1155
        %v1158 = vadd.f32 %v1148, %v1156
        %v1159 = vtanh.pop %v1158
        %1161 = vrot.lane.b32.xlu0 %v1159, 64
        %v1162 = vpop.permute.xlu0 %1161
        %v1164 = vmul.f32 %v1146, %v1162
        %v1165 = vmul.f32 %v1164, %v1091
        %1167 = vrot.lane.b32.xlu0 %v1165, 32
        %v1168 = vpop.permute.xlu0 %1167
        %v1170 = vsel %vm1098, %v1168, 0.0
        %1171 = vadd.xlane.f32.xlu0 %v1170
        %v1172 = vpop.xlane.xlu0 %1171
        %v1173 = vadd.f32 %v1172, %v1102
        %s1174 = scalar_lea.vmem %s318, 1
        %1175 = vst.msk [vmem:[%s1174] sm:$0x1] %vm1104, %v1173
        %v1176 = vld [vmem:[#allocation3 + $0x2] sm:$0x1]
        %v1177 = vpack.c.bf16 %v1164, %v1164
        %1179 = vrot.lane.b32.xlu0 %v1177, 32
        %v1180 = vpop.permute.xlu0 %1179
        %v1182 = vsel %vm1033, %v1180, 0
        %1184 = vmatpush.bf16.msra.mxu0 0
        %1185 = vmatpush.bf16.msra.mxu0 0
        %1186 = vmatpush.bf16.msra.mxu0 0
        %1187 = vmatpush.bf16.msra.mxu0 0
        %1188 = vmatpush.bf16.msra.mxu0 0
        %1189 = vmatpush.bf16.msra.mxu0 0
        %1190 = vmatpush.bf16.msra.mxu0 %v1030
        %1191 = vmatpush.bf16.msra.mxu0 %v1029
        %1192 = vmatmul.bf16.gmra.mxu0 %v1182
        %v1193 = vpop.f32.mrf.mxu0
        %v1194 = vadd.f32 0.0, %v1193
        %v1195 = vpop.f32.mrf.mxu0
        %1196 = vdwg.mxu0
        %v1197 = vadd.f32 %v1176, %v1194
        %v1198 = vxor.u32 %v1197, 2147483648
        %v1199 = vmul.f32 %v1198, 1.442695
        %v1200 = vpow.pop %v1199
        %v1201 = vadd.f32 %v1200, 1.0
        %v1202 = vrcp.pop %v1201
        %v1203 = vmul.f32 %v1201, %v1202
        %v1204 = vsub.f32 1.0, %v1203
        %v1205 = vmul.f32 %v1202, %v1204
        %v1206 = vadd.f32 %v1202, %v1205
        %vm1207 = vweird.f32 %v1201
        %vm1208 = vweird.f32 %v1202
        %vm1209 = vmor %vm1207, %vm1208
        %v1210 = vsel %vm1209, %v1202, %v1206
        %v1211 = vand.u32 2147483647, %v1201
        %vm1212 = vcmp.eq.f32.partialorder %v1211, 8.507059e+37
        %v1213 = vand.u32 %v1201, 2147483648
        %v1214 = vor.u32 1.1754944e-38, %v1213
        %v1215 = vsel %vm1212, %v1214, %v1210
        %v1216 = vmul.f32 1.0, %v1215
        %v1217 = vtanh.pop %v1197
        %v1218 = vmul.f32 %v1216, %v1158
        %1220 = vrot.lane.b32.xlu0 %v1217, 64
        %v1221 = vpop.permute.xlu0 %1220
        %v1223 = vmul.f32 %v1216, %v1221
        %1225 = vrot.lane.b32.xlu0 %v1223, 32
        %v1226 = vpop.permute.xlu0 %1225
        %v1228 = vadd.f32 %v1218, %v1226
        %v1229 = vtanh.pop %v1228
        %1231 = vrot.lane.b32.xlu0 %v1229, 64
        %v1232 = vpop.permute.xlu0 %1231
        %v1234 = vmul.f32 %v1216, %v1232
        %v1235 = vmul.f32 %v1234, %v1091
        %1237 = vrot.lane.b32.xlu0 %v1235, 32
        %v1238 = vpop.permute.xlu0 %1237
        %v1240 = vsel %vm1098, %v1238, 0.0
        %1241 = vadd.xlane.f32.xlu0 %v1240
        %v1242 = vpop.xlane.xlu0 %1241
        %v1243 = vadd.f32 %v1242, %v1102
        %s1244 = scalar_lea.vmem %s318, 2
        %1245 = vst.msk [vmem:[%s1244] sm:$0x1] %vm1104, %v1243
        %v1246 = vld [vmem:[#allocation3 + $0x3] sm:$0x1]
        %v1247 = vpack.c.bf16 %v1234, %v1234
        %1249 = vrot.lane.b32.xlu0 %v1247, 32
        %v1250 = vpop.permute.xlu0 %1249
        %v1252 = vsel %vm1033, %v1250, 0
        %1254 = vmatpush.bf16.msra.mxu0 0
        %1255 = vmatpush.bf16.msra.mxu0 0
        %1256 = vmatpush.bf16.msra.mxu0 0
        %1257 = vmatpush.bf16.msra.mxu0 0
        %1258 = vmatpush.bf16.msra.mxu0 0
        %1259 = vmatpush.bf16.msra.mxu0 0
        %1260 = vmatpush.bf16.msra.mxu0 %v1030
        %1261 = vmatpush.bf16.msra.mxu0 %v1029
        %1262 = vmatmul.bf16.gmra.mxu0 %v1252
        %v1263 = vpop.f32.mrf.mxu0
        %v1264 = vadd.f32 0.0, %v1263
        %v1265 = vpop.f32.mrf.mxu0
        %1266 = vdwg.mxu0
        %v1267 = vadd.f32 %v1246, %v1264
        %v1268 = vxor.u32 %v1267, 2147483648
        %v1269 = vmul.f32 %v1268, 1.442695
        %v1270 = vpow.pop %v1269
        %v1271 = vadd.f32 %v1270, 1.0
        %v1272 = vrcp.pop %v1271
        %v1273 = vmul.f32 %v1271, %v1272
        %v1274 = vsub.f32 1.0, %v1273
        %v1275 = vmul.f32 %v1272, %v1274
        %v1276 = vadd.f32 %v1272, %v1275
        %vm1277 = vweird.f32 %v1271
        %vm1278 = vweird.f32 %v1272
        %vm1279 = vmor %vm1277, %vm1278
        %v1280 = vsel %vm1279, %v1272, %v1276
        %v1281 = vand.u32 2147483647, %v1271
        %vm1282 = vcmp.eq.f32.partialorder %v1281, 8.507059e+37
        %v1283 = vand.u32 %v1271, 2147483648
        %v1284 = vor.u32 1.1754944e-38, %v1283
        %v1285 = vsel %vm1282, %v1284, %v1280
        %v1286 = vmul.f32 1.0, %v1285
        %v1287 = vtanh.pop %v1267
        %v1288 = vmul.f32 %v1286, %v1228
        %1290 = vrot.lane.b32.xlu0 %v1287, 64
        %v1291 = vpop.permute.xlu0 %1290
        %v1293 = vmul.f32 %v1286, %v1291
        %1295 = vrot.lane.b32.xlu0 %v1293, 32
        %v1296 = vpop.permute.xlu0 %1295
        %v1298 = vadd.f32 %v1288, %v1296
        %v1299 = vtanh.pop %v1298
        %1301 = vrot.lane.b32.xlu0 %v1299, 64
        %v1302 = vpop.permute.xlu0 %1301
        %v1304 = vmul.f32 %v1286, %v1302
        %v1305 = vmul.f32 %v1304, %v1091
        %1307 = vrot.lane.b32.xlu0 %v1305, 32
        %v1308 = vpop.permute.xlu0 %1307
        %v1310 = vsel %vm1098, %v1308, 0.0
        %1311 = vadd.xlane.f32.xlu0 %v1310
        %v1312 = vpop.xlane.xlu0 %1311
        %v1313 = vadd.f32 %v1312, %v1102
        %s1314 = scalar_lea.vmem %s318, 3
        %1315 = vst.msk [vmem:[%s1314] sm:$0x1] %vm1104, %v1313
        %v1316 = vld [vmem:[#allocation3 + $0x4] sm:$0x1]
        %v1317 = vpack.c.bf16 %v1304, %v1304
        %1319 = vrot.lane.b32.xlu0 %v1317, 32
        %v1320 = vpop.permute.xlu0 %1319
        %v1322 = vsel %vm1033, %v1320, 0
        %1324 = vmatpush.bf16.msra.mxu0 0
        %1325 = vmatpush.bf16.msra.mxu0 0
        %1326 = vmatpush.bf16.msra.mxu0 0
        %1327 = vmatpush.bf16.msra.mxu0 0
        %1328 = vmatpush.bf16.msra.mxu0 0
        %1329 = vmatpush.bf16.msra.mxu0 0
        %1330 = vmatpush.bf16.msra.mxu0 %v1030
        %1331 = vmatpush.bf16.msra.mxu0 %v1029
        %1332 = vmatmul.bf16.gmra.mxu0 %v1322
        %v1333 = vpop.f32.mrf.mxu0
        %v1334 = vadd.f32 0.0, %v1333
        %v1335 = vpop.f32.mrf.mxu0
        %1336 = vdwg.mxu0
        %v1337 = vadd.f32 %v1316, %v1334
        %v1338 = vxor.u32 %v1337, 2147483648
        %v1339 = vmul.f32 %v1338, 1.442695
        %v1340 = vpow.pop %v1339
        %v1341 = vadd.f32 %v1340, 1.0
        %v1342 = vrcp.pop %v1341
        %v1343 = vmul.f32 %v1341, %v1342
        %v1344 = vsub.f32 1.0, %v1343
        %v1345 = vmul.f32 %v1342, %v1344
        %v1346 = vadd.f32 %v1342, %v1345
        %vm1347 = vweird.f32 %v1341
        %vm1348 = vweird.f32 %v1342
        %vm1349 = vmor %vm1347, %vm1348
        %v1350 = vsel %vm1349, %v1342, %v1346
        %v1351 = vand.u32 2147483647, %v1341
        %vm1352 = vcmp.eq.f32.partialorder %v1351, 8.507059e+37
        %v1353 = vand.u32 %v1341, 2147483648
        %v1354 = vor.u32 1.1754944e-38, %v1353
        %v1355 = vsel %vm1352, %v1354, %v1350
        %v1356 = vmul.f32 1.0, %v1355
        %v1357 = vtanh.pop %v1337
        %v1358 = vmul.f32 %v1356, %v1298
        %1360 = vrot.lane.b32.xlu0 %v1357, 64
        %v1361 = vpop.permute.xlu0 %1360
        %v1363 = vmul.f32 %v1356, %v1361
        %1365 = vrot.lane.b32.xlu0 %v1363, 32
        %v1366 = vpop.permute.xlu0 %1365
        %v1368 = vadd.f32 %v1358, %v1366
        %v1369 = vtanh.pop %v1368
        %1371 = vrot.lane.b32.xlu0 %v1369, 64
        %v1372 = vpop.permute.xlu0 %1371
        %v1374 = vmul.f32 %v1356, %v1372
        %v1375 = vmul.f32 %v1374, %v1091
        %1377 = vrot.lane.b32.xlu0 %v1375, 32
        %v1378 = vpop.permute.xlu0 %1377
        %v1380 = vsel %vm1098, %v1378, 0.0
        %1381 = vadd.xlane.f32.xlu0 %v1380
        %v1382 = vpop.xlane.xlu0 %1381
        %v1383 = vadd.f32 %v1382, %v1102
        %s1384 = scalar_lea.vmem %s318, 4
        %1385 = vst.msk [vmem:[%s1384] sm:$0x1] %vm1104, %v1383
        %v1386 = vld [vmem:[#allocation3 + $0x5] sm:$0x1]
        %v1387 = vpack.c.bf16 %v1374, %v1374
        %1389 = vrot.lane.b32.xlu0 %v1387, 32
        %v1390 = vpop.permute.xlu0 %1389
        %v1392 = vsel %vm1033, %v1390, 0
        %1394 = vmatpush.bf16.msra.mxu0 0
        %1395 = vmatpush.bf16.msra.mxu0 0
        %1396 = vmatpush.bf16.msra.mxu0 0
        %1397 = vmatpush.bf16.msra.mxu0 0
        %1398 = vmatpush.bf16.msra.mxu0 0
        %1399 = vmatpush.bf16.msra.mxu0 0
        %1400 = vmatpush.bf16.msra.mxu0 %v1030
        %1401 = vmatpush.bf16.msra.mxu0 %v1029
        %1402 = vmatmul.bf16.gmra.mxu0 %v1392
        %v1403 = vpop.f32.mrf.mxu0
        %v1404 = vadd.f32 0.0, %v1403
        %v1405 = vpop.f32.mrf.mxu0
        %1406 = vdwg.mxu0
        %v1407 = vadd.f32 %v1386, %v1404
        %v1408 = vxor.u32 %v1407, 2147483648
        %v1409 = vmul.f32 %v1408, 1.442695
        %v1410 = vpow.pop %v1409
        %v1411 = vadd.f32 %v1410, 1.0
        %v1412 = vrcp.pop %v1411
        %v1413 = vmul.f32 %v1411, %v1412
        %v1414 = vsub.f32 1.0, %v1413
        %v1415 = vmul.f32 %v1412, %v1414
        %v1416 = vadd.f32 %v1412, %v1415
        %vm1417 = vweird.f32 %v1411
        %vm1418 = vweird.f32 %v1412
        %vm1419 = vmor %vm1417, %vm1418
        %v1420 = vsel %vm1419, %v1412, %v1416
        %v1421 = vand.u32 2147483647, %v1411
        %vm1422 = vcmp.eq.f32.partialorder %v1421, 8.507059e+37
        %v1423 = vand.u32 %v1411, 2147483648
        %v1424 = vor.u32 1.1754944e-38, %v1423
        %v1425 = vsel %vm1422, %v1424, %v1420
        %v1426 = vmul.f32 1.0, %v1425
        %v1427 = vtanh.pop %v1407
        %v1428 = vmul.f32 %v1426, %v1368
        %1430 = vrot.lane.b32.xlu0 %v1427, 64
        %v1431 = vpop.permute.xlu0 %1430
        %v1433 = vmul.f32 %v1426, %v1431
        %1435 = vrot.lane.b32.xlu0 %v1433, 32
        %v1436 = vpop.permute.xlu0 %1435
        %v1438 = vadd.f32 %v1428, %v1436
        %v1439 = vtanh.pop %v1438
        %1441 = vrot.lane.b32.xlu0 %v1439, 64
        %v1442 = vpop.permute.xlu0 %1441
        %v1444 = vmul.f32 %v1426, %v1442
        %v1445 = vmul.f32 %v1444, %v1091
        %1447 = vrot.lane.b32.xlu0 %v1445, 32
        %v1448 = vpop.permute.xlu0 %1447
        %v1450 = vsel %vm1098, %v1448, 0.0
        %1451 = vadd.xlane.f32.xlu0 %v1450
        %v1452 = vpop.xlane.xlu0 %1451
        %v1453 = vadd.f32 %v1452, %v1102
        %s1454 = scalar_lea.vmem %s318, 5
        %1455 = vst.msk [vmem:[%s1454] sm:$0x1] %vm1104, %v1453
        %v1456 = vld [vmem:[#allocation3 + $0x6] sm:$0x1]
        %v1457 = vpack.c.bf16 %v1444, %v1444
        %1459 = vrot.lane.b32.xlu0 %v1457, 32
        %v1460 = vpop.permute.xlu0 %1459
        %v1462 = vsel %vm1033, %v1460, 0
        %1464 = vmatpush.bf16.msra.mxu0 0
        %1465 = vmatpush.bf16.msra.mxu0 0
        %1466 = vmatpush.bf16.msra.mxu0 0
        %1467 = vmatpush.bf16.msra.mxu0 0
        %1468 = vmatpush.bf16.msra.mxu0 0
        %1469 = vmatpush.bf16.msra.mxu0 0
        %1470 = vmatpush.bf16.msra.mxu0 %v1030
        %1471 = vmatpush.bf16.msra.mxu0 %v1029
        %1472 = vmatmul.bf16.gmra.mxu0 %v1462
        %v1473 = vpop.f32.mrf.mxu0
        %v1474 = vadd.f32 0.0, %v1473
        %v1475 = vpop.f32.mrf.mxu0
        %1476 = vdwg.mxu0
        %v1477 = vadd.f32 %v1456, %v1474
        %v1478 = vxor.u32 %v1477, 2147483648
        %v1479 = vmul.f32 %v1478, 1.442695
        %v1480 = vpow.pop %v1479
        %v1481 = vadd.f32 %v1480, 1.0
        %v1482 = vrcp.pop %v1481
        %v1483 = vmul.f32 %v1481, %v1482
        %v1484 = vsub.f32 1.0, %v1483
        %v1485 = vmul.f32 %v1482, %v1484
        %v1486 = vadd.f32 %v1482, %v1485
        %vm1487 = vweird.f32 %v1481
        %vm1488 = vweird.f32 %v1482
        %vm1489 = vmor %vm1487, %vm1488
        %v1490 = vsel %vm1489, %v1482, %v1486
        %v1491 = vand.u32 2147483647, %v1481
        %vm1492 = vcmp.eq.f32.partialorder %v1491, 8.507059e+37
        %v1493 = vand.u32 %v1481, 2147483648
        %v1494 = vor.u32 1.1754944e-38, %v1493
        %v1495 = vsel %vm1492, %v1494, %v1490
        %v1496 = vmul.f32 1.0, %v1495
        %v1497 = vtanh.pop %v1477
        %v1498 = vmul.f32 %v1496, %v1438
        %1500 = vrot.lane.b32.xlu0 %v1497, 64
        %v1501 = vpop.permute.xlu0 %1500
        %v1503 = vmul.f32 %v1496, %v1501
        %1505 = vrot.lane.b32.xlu0 %v1503, 32
        %v1506 = vpop.permute.xlu0 %1505
        %v1508 = vadd.f32 %v1498, %v1506
        %v1509 = vtanh.pop %v1508
        %1511 = vrot.lane.b32.xlu0 %v1509, 64
        %v1512 = vpop.permute.xlu0 %1511
        %v1514 = vmul.f32 %v1496, %v1512
        %v1515 = vmul.f32 %v1514, %v1091
        %1517 = vrot.lane.b32.xlu0 %v1515, 32
        %v1518 = vpop.permute.xlu0 %1517
        %v1520 = vsel %vm1098, %v1518, 0.0
        %1521 = vadd.xlane.f32.xlu0 %v1520
        %v1522 = vpop.xlane.xlu0 %1521
        %v1523 = vadd.f32 %v1522, %v1102
        %s1524 = scalar_lea.vmem %s318, 6
        %1525 = vst.msk [vmem:[%s1524] sm:$0x1] %vm1104, %v1523
        %v1526 = vld [vmem:[#allocation3 + $0x7] sm:$0x1]
        %v1527 = vpack.c.bf16 %v1514, %v1514
        %1529 = vrot.lane.b32.xlu0 %v1527, 32
        %v1530 = vpop.permute.xlu0 %1529
        %v1532 = vsel %vm1033, %v1530, 0
        %1534 = vmatpush.bf16.msra.mxu0 0
        %1535 = vmatpush.bf16.msra.mxu0 0
        %1536 = vmatpush.bf16.msra.mxu0 0
        %1537 = vmatpush.bf16.msra.mxu0 0
        %1538 = vmatpush.bf16.msra.mxu0 0
        %1539 = vmatpush.bf16.msra.mxu0 0
        %1540 = vmatpush.bf16.msra.mxu0 %v1030
        %1541 = vmatpush.bf16.msra.mxu0 %v1029
        %1542 = vmatmul.bf16.gmra.mxu0 %v1532
        %v1543 = vpop.f32.mrf.mxu0
        %v1544 = vadd.f32 0.0, %v1543
        %v1545 = vpop.f32.mrf.mxu0
        %1546 = vdwg.mxu0
        %v1547 = vadd.f32 %v1526, %v1544
        %v1548 = vxor.u32 %v1547, 2147483648
        %v1549 = vmul.f32 %v1548, 1.442695
        %v1550 = vpow.pop %v1549
        %v1551 = vadd.f32 %v1550, 1.0
        %v1552 = vrcp.pop %v1551
        %v1553 = vmul.f32 %v1551, %v1552
        %v1554 = vsub.f32 1.0, %v1553
        %v1555 = vmul.f32 %v1552, %v1554
        %v1556 = vadd.f32 %v1552, %v1555
        %vm1557 = vweird.f32 %v1551
        %vm1558 = vweird.f32 %v1552
        %vm1559 = vmor %vm1557, %vm1558
        %v1560 = vsel %vm1559, %v1552, %v1556
        %v1561 = vand.u32 2147483647, %v1551
        %vm1562 = vcmp.eq.f32.partialorder %v1561, 8.507059e+37
        %v1563 = vand.u32 %v1551, 2147483648
        %v1564 = vor.u32 1.1754944e-38, %v1563
        %v1565 = vsel %vm1562, %v1564, %v1560
        %v1566 = vmul.f32 1.0, %v1565
        %v1567 = vtanh.pop %v1547
        %v1568 = vmul.f32 %v1566, %v1508
        %1570 = vrot.lane.b32.xlu0 %v1567, 64
        %v1571 = vpop.permute.xlu0 %1570
        %v1573 = vmul.f32 %v1566, %v1571
        %1575 = vrot.lane.b32.xlu0 %v1573, 32
        %v1576 = vpop.permute.xlu0 %1575
        %v1578 = vadd.f32 %v1568, %v1576
        %v1579 = vtanh.pop %v1578
        %1581 = vrot.lane.b32.xlu0 %v1579, 64
        %v1582 = vpop.permute.xlu0 %1581
        %v1584 = vmul.f32 %v1566, %v1582
        %v1585 = vmul.f32 %v1584, %v1091
        %1587 = vrot.lane.b32.xlu0 %v1585, 32
        %v1588 = vpop.permute.xlu0 %1587
        %v1590 = vsel %vm1098, %v1588, 0.0
        %1591 = vadd.xlane.f32.xlu0 %v1590
        %v1592 = vpop.xlane.xlu0 %1591
        %v1593 = vadd.f32 %v1592, %v1102
        %s1594 = scalar_lea.vmem %s318, 7
        %1595 = vst.msk [vmem:[%s1594] sm:$0x1] %vm1104, %v1593
        %v1596 = vld [vmem:[%s318] sm:$0x1]
        %v1597 = vld [vmem:[%s318 + $0x1] sm:$0x1]
        %v1598 = vld [vmem:[%s318 + $0x2] sm:$0x1]
        %v1599 = vld [vmem:[%s318 + $0x3] sm:$0x1]
        %v1600 = vld [vmem:[%s318 + $0x4] sm:$0x1]
        %v1601 = vld [vmem:[%s318 + $0x5] sm:$0x1]
        %v1602 = vld [vmem:[%s318 + $0x6] sm:$0x1]
        %v1603 = vld [vmem:[%s318 + $0x7] sm:$0x1]
        %v1604 = vlaneseq
        %vm1605 = vcmp.ge.s32.totalorder %v1604, 0
        %vm1606 = vcmp.lt.s32.totalorder %v1604, 1
        %vm1607 = vmand %vm1605, %vm1606
        %v1608 = vsel %vm1607, %v1596, -inf
        %v1609 = vsel %vm1607, %v1597, -inf
        %v1610 = vsel %vm1607, %v1598, -inf
        %v1611 = vsel %vm1607, %v1599, -inf
        %v1612 = vsel %vm1607, %v1600, -inf
        %v1613 = vmax.f32 %v1608, %v1612
        %v1614 = vsel %vm1607, %v1601, -inf
        %v1615 = vmax.f32 %v1609, %v1614
        %v1616 = vsel %vm1607, %v1602, -inf
        %v1617 = vmax.f32 %v1610, %v1616
        %v1618 = vsel %vm1607, %v1603, -inf
        %v1619 = vmax.f32 %v1611, %v1618
        %v1620 = vmax.f32 %v1613, %v1615
        %v1621 = vmax.f32 %v1617, %v1619
        %v1622 = vmax.f32 %v1620, %v1621
        %v1623 = vsub.f32 %v1596, %v1622
        %v1624 = vsub.f32 %v1597, %v1622
        %v1625 = vsub.f32 %v1598, %v1622
        %v1626 = vsub.f32 %v1599, %v1622
        %v1627 = vsub.f32 %v1600, %v1622
        %v1628 = vsub.f32 %v1601, %v1622
        %v1629 = vsub.f32 %v1602, %v1622
        %v1630 = vsub.f32 %v1603, %v1622
        %v1631 = vmul.f32 %v1623, 1.442695
        %v1632 = vpow.pop %v1631
        %v1633 = vmul.f32 %v1624, 1.442695
        %v1634 = vpow.pop %v1633
        %v1635 = vmul.f32 %v1625, 1.442695
        %v1636 = vpow.pop %v1635
        %v1637 = vmul.f32 %v1626, 1.442695
        %v1638 = vpow.pop %v1637
        %v1639 = vmul.f32 %v1627, 1.442695
        %v1640 = vpow.pop %v1639
        %v1641 = vmul.f32 %v1628, 1.442695
        %v1642 = vpow.pop %v1641
        %v1643 = vmul.f32 %v1629, 1.442695
        %v1644 = vpow.pop %v1643
        %v1645 = vmul.f32 %v1630, 1.442695
        %v1646 = vpow.pop %v1645
        %v1647 = vsel %vm1104, %v1632, 0.0
        %v1648 = vsel %vm1104, %v1634, 0.0
        %v1649 = vadd.f32 %v1647, %v1648
        %v1650 = vsel %vm1104, %v1636, 0.0
        %v1651 = vadd.f32 %v1649, %v1650
        %v1652 = vsel %vm1104, %v1638, 0.0
        %v1653 = vadd.f32 %v1651, %v1652
        %v1654 = vsel %vm1104, %v1640, 0.0
        %v1655 = vadd.f32 %v1653, %v1654
        %v1656 = vsel %vm1104, %v1642, 0.0
        %v1657 = vadd.f32 %v1655, %v1656
        %v1658 = vsel %vm1104, %v1644, 0.0
        %v1659 = vadd.f32 %v1657, %v1658
        %v1660 = vsel %vm1104, %v1646, 0.0
        %v1661 = vadd.f32 %v1659, %v1660
        %v1662 = vrcp.pop %v1661
        %v1663 = vmul.f32 %v1661, %v1662
        %v1664 = vsub.f32 1.0, %v1663
        %v1665 = vmul.f32 %v1662, %v1664
        %v1666 = vadd.f32 %v1662, %v1665
        %vm1667 = vweird.f32 %v1661
        %vm1668 = vweird.f32 %v1662
        %vm1669 = vmor %vm1667, %vm1668
        %v1670 = vsel %vm1669, %v1662, %v1666
        %v1671 = vand.u32 2147483647, %v1661
        %vm1672 = vcmp.eq.f32.partialorder %v1671, 8.507059e+37
        %v1673 = vand.u32 %v1661, 2147483648
        %v1674 = vor.u32 1.1754944e-38, %v1673
        %v1675 = vsel %vm1672, %v1674, %v1670
        %v1676 = vmul.f32 %v1632, %v1675
        %v1677 = vmul.f32 %v1634, %v1675
        %v1678 = vmul.f32 %v1636, %v1675
        %v1679 = vmul.f32 %v1638, %v1675
        %v1680 = vmul.f32 %v1640, %v1675
        %v1681 = vmul.f32 %v1642, %v1675
        %v1682 = vmul.f32 %v1644, %v1675
        %v1683 = vmul.f32 %v1646, %v1675
        %1684 = vst.msk [vmem:[%s318] sm:$0x1] %vm1104, %v1676
        %1685 = vst.msk [vmem:[%s318 + $0x1] sm:$0x1] %vm1104, %v1677
        %1686 = vst.msk [vmem:[%s318 + $0x2] sm:$0x1] %vm1104, %v1678
        %1687 = vst.msk [vmem:[%s318 + $0x3] sm:$0x1] %vm1104, %v1679
        %1688 = vst.msk [vmem:[%s318 + $0x4] sm:$0x1] %vm1104, %v1680
        %1689 = vst.msk [vmem:[%s318 + $0x5] sm:$0x1] %vm1104, %v1681
        %1690 = vst.msk [vmem:[%s318 + $0x6] sm:$0x1] %vm1104, %v1682
        %1691 = vst.msk [vmem:[%s318 + $0x7] sm:$0x1] %vm1104, %v1683
        %p1692 = scmp.lt.s32.totalorder %s32, 1
        %s1693 = scalar_select %p1692, %s32, 1
        %s1694 = smul.addr %s1693, 8
        %s1695 = scalar_lea.vmem %s9, %s1694
        // Predicated region
        $region61: #{forward.1} parent=47 // pred_check
          %p1696 = pneg %p197
        $region62: #{forward.1} parent=47 // pred_check_branch
          %1698 = sbr.rel (%p1696) target = $region64
        $region63: #{forward.1} parent=47 // pred_region
          _
        $region64: #{forward.1} parent=47 // pred_fallthru
          _
      $region48: #{forward.1} parent=5 // pred_fallthru
        _
      %p1699 = scmp.le.s32.totalorder 2, %s27
      // Predicated region
      $region65: #{forward.1} parent=5 // pred_check
        %p1700 = pneg %p1699
      $region66: #{forward.1} parent=5 // pred_check_branch
        %1702 = sbr.rel (%p1700) target = $region68
      $region67: #{forward.1} parent=5 // pred_region
        %s1703 = ssub.s32 %s27, 2
        // Predicated region
        $region69: #{forward.1} parent=67 // pred_check
          %p1704 = pneg %p203
        $region70: #{forward.1} parent=67 // pred_check_branch
          %1706 = sbr.rel (%p1704) target = $region72
        $region71: #{forward.1} parent=67 // pred_region
          %p1707 = scmp.lt.s32.totalorder %s33, 1
          %s1708 = scalar_select %p1707, %s33, 1
          %s1709 = smul.addr %s1708, 8
          %s1710 = scalar_lea.vmem %s9, %s1709
        $region72: #{forward.1} parent=67 // pred_fallthru
          _
      $region68: #{forward.1} parent=5 // pred_fallthru
        _
    $region6: #{forward.1} parent=1 // loop_footer
      %s31 = sadd.s32 1, %s27
    $region7: #{forward.1} parent=1 // loop_footer_branch
      %26 = sbr.rel target = $region3
    $region8: #{forward.1} parent=1 // loop_exit
      _
    %1711 = vsyncpa [#allocation9], 1
    %s1712 = scalar_lea.sflag [#allocation9], 1
    %1713 = vsyncpa %s1712, 1
    %1714 = vsyncpa [#allocation11], 1
  %1715 = vsyncmov [#allocation4]
  %s1716 = vpop.sfrf %1715
  %p1717 = scmp.eq.s32.totalorder %s1716, 0
  %p1718 = pneg %p1717
  %1720 = shalt.err (%p1718)

</llo_original>
